<compile_context>
chip_gen: v6e
topology: v6e:2x2x1
jax: 0.10.0
libtpu: 0.0.40
codegen_flags: <defaults>
</compile_context>

<pallas_src>
import functools

import jax
import jax.numpy as jnp
from jax.experimental import pallas as pl
from jax.experimental.pallas import tpu as pltpu


def _round_up(a, b):
    return -(-a // b) * b


def _cdiv(a, b):
    return -(-a // b)


# ------------------------------------------------------------------ kernel body
def _conv_swiglu_kernel(x_ref, w12_ref, b12_ref, w3_ref, b3_ref, o_ref, *scratch,
                        n_hblocks, compute_dtype):
    hc = pl.program_id(2)              # hidden-chunk index (reduction axis, innermost)
    x = x_ref[0]                       # (C, thw): channels on sublanes, pixels on lanes

    # The two 1x1 convs (current W1 / W2 chunk): (h_blk, C) @ (C, thw) MXU GEMMs,
    # f32 accumulation; bf16 operands stay bf16 on the MXU.
    h1 = jnp.dot(w12_ref[0], x, preferred_element_type=jnp.float32) + b12_ref[0]
    h2 = jnp.dot(w12_ref[1], x, preferred_element_type=jnp.float32) + b12_ref[1]

    # SwiGLU elementwise math.  bf16 inputs -> bf16 VPU/EUP math (halves the
    # temporary footprint; native on v6e/v7x); f32 inputs stay f32 (bit-close
    # to the reference).
    h1 = h1.astype(compute_dtype)
    h2 = h2.astype(compute_dtype)
    gated = (h1 * jax.nn.sigmoid(h1)) * h2                     # SiLU(xW1+b1)*(xW2+b2)

    # ffn_ln = Identity (subln=False default); Dropout(p=0.0) = identity.
    part = jnp.dot(w3_ref[...], gated.astype(w3_ref.dtype),
                   preferred_element_type=jnp.float32)         # (out_ch, thw)

    if n_hblocks == 1:
        # Hidden fully resident: no accumulator round-trip.
        o_ref[0] = (part + b3_ref[...]).astype(o_ref.dtype)
    else:
        acc_ref = scratch[0]

        @pl.when(hc == 0)
        def _init():
            acc_ref[...] = part + b3_ref[...]

        @pl.when(hc != 0)
        def _accum():
            acc_ref[...] += part

        @pl.when(hc == n_hblocks - 1)
        def _finalize():
            o_ref[0] = acc_ref[...].astype(o_ref.dtype)


# ------------------------------------------------------------------ tiling plan
def make_plan(B, C, H, W, hidden, out_ch, x_dtype, w_dtype, *,
              spatial_tile=None, max_hidden_block=None):
    """Pick (thw, h_blk) so everything fits the chip's VMEM with headroom."""
    x_item = jnp.dtype(x_dtype).itemsize
    w_item = jnp.dtype(w_dtype).itemsize
    compute_dtype = (jnp.bfloat16 if jnp.dtype(x_dtype) == jnp.dtype(jnp.bfloat16)
                     else jnp.float32)
    c_item = jnp.dtype(compute_dtype).itemsize
    sub = 16 if min(x_item, w_item) <= 2 else 8            # sublane tile (f32:8, bf16:16)

    HW = H * W
    hw_cap = _round_up(HW, 128)

    # VMEM budget: physical capacity minus headroom for Mosaic scratch / spill.
    # (v5e/v6e: 128 MiB -> ~112 MiB; v7x: 64 MiB -> ~56 MiB; fallback is conservative.)
    try:
        vmem_cap = int(pltpu.get_tpu_info().vmem_capacity_bytes)
    except Exception:
        vmem_cap = 64 * 2 ** 20
    budget = vmem_cap - max(8 * 2 ** 20, vmem_cap // 8)

    # Lane-tile target: small-C shapes are HBM-bound -> bigger tiles amortize the
    # ~0.35us/step cost; large-C shapes are MXU-bound -> 1024 is plenty.
    if spatial_tile is None:
        spatial_tile = 4096 if C <= 64 else (2048 if C <= 256 else 1024)
    thw_max = max(128, min(_round_up(spatial_tile, 128), hw_cap))

    # Hidden-chunk candidates: fully resident first, then 128-multiples that
    # exactly divide round_up(hidden, 128) (keeps weight blocks tile-aligned).
    h_single = _round_up(hidden, sub)
    h_cands = [(h_single, 1)]
    if hidden > 128:
        k = _round_up(hidden, 128) // 128
        for m in range(k - 1, 0, -1):
            if k % m == 0:
                h_cands.append((m * 128, k // m))
    if max_hidden_block is not None:
        h_cands = [c for c in h_cands if c[0] <= max_hidden_block] or h_cands[-1:]

    def est(thw, h_blk, n_h):
        nw = 1 if n_h == 1 else 2                           # weight buffer count
        b = 0
        b += 2 * _round_up(C, sub) * thw * x_item           # x tile (double buffered)
        b += 2 * _round_up(out_ch, sub) * thw * x_item      # out tile (double buffered)
        b += nw * 2 * h_blk * _round_up(C, 128) * w_item    # W1||W2 chunk
        b += nw * 2 * h_blk * 128 * w_item                  # b1||b2 (lane-padded column)
        b += nw * _round_up(out_ch, sub) * _round_up(h_blk, 128) * w_item   # W3 chunk
        b += _round_up(out_ch, sub) * 128 * w_item          # b3
        b += 4 * h_blk * thw * c_item                       # h1/h2/gated live values
        b += 2 * _round_up(out_ch, 8) * thw * 4             # part + f32 accumulator
        return b

    # Prefer the biggest lane tile; shrink the hidden chunk before shrinking thw.
    sel = None
    thw = thw_max
    while True:
        for h_blk, n_h in h_cands:
            if est(thw, h_blk, n_h) <= budget:
                sel = (thw, h_blk, n_h)
                break
        if sel is not None or thw <= 128:
            break
        thw = max(128, (_round_up(thw // 2, 128) if thw > 1024 else thw - 128))
    if sel is None:
        sel = (128,) + h_cands[-1]
    thw, h_blk, n_h = sel

    # v7x megacore: make sure both TensorCores get 'parallel' grid work.
    while B * _cdiv(HW, thw) < 2 and thw > 128:
        thw = max(128, _round_up(thw // 2, 128))

    return dict(thw=thw, h_blk=h_blk, n_h=n_h, hidden_pad=h_blk * n_h,
                compute_dtype=compute_dtype, vmem_limit=int(budget))


# -------------------------------------------------------- one-time weight fusion
def fuse_params(w1, b1, w2, b2, w3, b3, hidden_pad):
    """Pre-fuse/transpose the 1x1-conv weights once (hoisted out of the hot path).

    w1/w2: (C, hidden), w3: (hidden, out) in x@W orientation.
    Returns w12s (2, hidden_pad, C), b12s (2, hidden_pad, 1), w3t (out, hidden_pad),
    b3r (out, 1).  Zero-padded hidden rows/cols contribute exactly zero.
    """
    hidden = w1.shape[1]
    ph = hidden_pad - hidden

    def pad_rows(wt):
        return jnp.pad(wt, ((0, ph), (0, 0))) if ph else wt

    def pad_vec(b):
        return jnp.pad(b, (0, ph)) if ph else b

    w12s = jnp.stack([pad_rows(w1.T), pad_rows(w2.T)], axis=0)
    b12s = jnp.stack([pad_vec(b1), pad_vec(b2)], axis=0)[..., None]
    w3t = w3.T
    if ph:
        w3t = jnp.pad(w3t, ((0, 0), (0, ph)))
    b3r = b3[:, None]
    return w12s, b12s, w3t, b3r


# --------------------------------------------------------------------- the call
def conv_swiglu_fused(x_nchw, w12s, b12s, w3t, b3r, *, plan):
    B, C, H, W = x_nchw.shape
    HW = H * W
    out_ch = w3t.shape[0]
    hid_pad = w3t.shape[1]
    thw, h_blk, n_h = plan["thw"], plan["h_blk"], plan["n_h"]
    n_sp = _cdiv(HW, thw)
    weights_invariant = (n_h == 1)

    kernel = functools.partial(_conv_swiglu_kernel, n_hblocks=n_h,
                               compute_dtype=plan["compute_dtype"])

    # NCHW -> (B, C, HW) is a free view; no jnp.pad and no output slice: the ragged
    # spatial tail is handled by Pallas boundary blocks (masked writeback).
    x3 = x_nchw.reshape(B, C, HW)

    x_item = jnp.dtype(x_nchw.dtype).itemsize
    w_item = jnp.dtype(w12s.dtype).itemsize
    weight_bytes = (w12s.size + b12s.size + w3t.size + b3r.size) * w_item
    n_pix = B * HW
    cost = pl.CostEstimate(
        flops=2 * n_pix * C * 2 * hid_pad + 2 * n_pix * hid_pad * out_ch,
        transcendentals=n_pix * hid_pad,
        bytes_accessed=(B * C * HW + B * out_ch * HW) * x_item + weight_bytes)

    def build(use_single_buffer):
        def wspec(shape, index_map, invariant):
            # Grid-invariant operands get a single VMEM buffer instead of two.
            if use_single_buffer and invariant:
                return pl.BlockSpec(shape, index_map, pipeline_mode=pl.Buffered(1))
            return pl.BlockSpec(shape, index_map)

        in_specs = [
            pl.BlockSpec((1, C, thw), lambda b, j, hc: (b, 0, j)),                 # x tile
            wspec((2, h_blk, C), lambda b, j, hc: (0, hc, 0), weights_invariant),  # W1||W2
            wspec((2, h_blk, 1), lambda b, j, hc: (0, hc, 0), weights_invariant),  # b1||b2
            wspec((out_ch, h_blk), lambda b, j, hc: (0, hc), weights_invariant),   # W3
            wspec((out_ch, 1), lambda b, j, hc: (0, 0), True),                     # b3
        ]
        scratch = [] if n_h == 1 else [pltpu.VMEM((out_ch, thw), jnp.float32)]
        return pl.pallas_call(
            kernel,
            out_shape=jax.ShapeDtypeStruct((B, out_ch, HW), x_nchw.dtype),
            grid_spec=pltpu.PrefetchScalarGridSpec(
                num_scalar_prefetch=0,
                grid=(B, n_sp, n_h),
                in_specs=in_specs,
                out_specs=pl.BlockSpec((1, out_ch, thw), lambda b, j, hc: (b, 0, j)),
                scratch_shapes=scratch),
            compiler_params=pltpu.CompilerParams(
                dimension_semantics=("parallel", "parallel", "arbitrary"),
                vmem_limit_bytes=plan["vmem_limit"]),
            cost_estimate=cost,
        )

    try:
        y3 = build(True)(x3, w12s, b12s, w3t, b3r)
    except Exception:
        # pipeline_mode / Buffered(1) unsupported on this jax version -> default buffering.
        y3 = build(False)(x3, w12s, b12s, w3t, b3r)

    return y3.reshape(B, out_ch, H, W)   # free reshape, NCHW out (matches the module)


def conv_swiglu(x, w1, b1, w2, b2, w3, b3, *, spatial_tile=None, max_hidden_block=None):
    """Convenience wrapper taking raw (un-fused) parameters."""
    B, C, H, W = x.shape
    hidden = w1.shape[1]
    out_ch = w3.shape[1]
    assert hidden == C, "reference .view(B, C, H, W) requires hidden_features == in_features"
    plan = make_plan(B, C, H, W, hidden, out_ch, x.dtype, w1.dtype,
                     spatial_tile=spatial_tile, max_hidden_block=max_hidden_block)
    fused = fuse_params(w1, b1, w2, b2, w3, b3, plan["hidden_pad"])
    return conv_swiglu_fused(x, *fused, plan=plan)


# ----------------------------------------------------------------- reference/init
def init_params(key, in_features, hidden_features, out_features, dtype=jnp.float32):
    """Deterministic init mirroring nn.Conv2d defaults (kaiming-uniform-ish bounds)."""
    ks = jax.random.split(key, 6)

    def conv_init(kw, kb, cin, cout):
        bound = 1.0 / jnp.sqrt(cin)
        w = jax.random.uniform(kw, (cin, cout), dtype, -bound, bound)   # x @ W orientation
        b = jax.random.uniform(kb, (cout,), dtype, -bound, bound)
        return w, b

    w1, b1 = conv_init(ks[0], ks[1], in_features, hidden_features)
    w2, b2 = conv_init(ks[2], ks[3], in_features, hidden_features)
    w3, b3 = conv_init(ks[4], ks[5], hidden_features, out_features)
    return w1, b1, w2, b2, w3, b3


def reference(x, w1, b1, w2, b2, w3, b3):
    """Plain-JAX reference of the PyTorch forward (NCHW in/out)."""
    B, C, H, W = x.shape
    xr = jnp.transpose(x, (0, 2, 3, 1)).reshape(-1, C)
    h1 = xr @ w1 + b1
    h2 = xr @ w2 + b2
    hid = jax.nn.silu(h1) * h2
    y = hid @ w3 + b3
    return jnp.transpose(y.reshape(B, H, W, -1), (0, 3, 1, 2))


if __name__ == "__main__":
    kx, kp, kxc, kpc = jax.random.split(jax.random.PRNGKey(0), 4)

    B, C, H, W = 2, 4, 16, 16
    in_features = C
    hidden_features = C      # required by the reference .view()
    out_features = C

    x = jax.random.normal(kx, (B, C, H, W), jnp.float32)
    params = init_params(kp, in_features, hidden_features, out_features)
    y_ref = reference(x, *params)

    # f32 path, weight fusion hoisted out of the hot path (plan + fuse done once).
    plan = make_plan(B, C, H, W, hidden_features, out_features, x.dtype, params[0].dtype)
    fused = fuse_params(*params, hidden_pad=plan["hidden_pad"])
    y = jax.block_until_ready(conv_swiglu_fused(x, *fused, plan=plan))
    assert y.shape == (B, out_features, H, W)
    assert jnp.allclose(y, y_ref, atol=1e-5, rtol=1e-5), "mismatch vs reference (f32)"

    # bf16 mixed-precision path (bf16 MXU operands + bf16 SwiGLU math, f32 accumulation).
    x_bf = x.astype(jnp.bfloat16)
    params_bf = [p.astype(jnp.bfloat16) for p in params]
    y_bf = jax.block_until_ready(conv_swiglu(x_bf, *params_bf))
    assert y_bf.shape == (B, out_features, H, W)
    y_bf32 = y_bf.astype(jnp.float32)
    assert bool(jnp.all(jnp.isfinite(y_bf32)))
    assert jnp.allclose(y_bf32, y_ref, atol=1e-1, rtol=1e-1), "mismatch vs reference (bf16)"

    # Hidden-chunked path (the v7x VMEM-bounding path): force h_blk=128 at hidden=256,
    # also exercises ragged-spatial-tail handling (HW=64 < thw=128).
    Bc, Cc, Hc, Wc = 1, 256, 8, 8
    xc = jax.random.normal(kxc, (Bc, Cc, Hc, Wc), jnp.float32)
    pc = init_params(kpc, Cc, Cc, Cc)
    yc = jax.block_until_ready(conv_swiglu(xc, *pc, max_hidden_block=128))
    yc_ref = reference(xc, *pc)
    assert yc.shape == (Bc, Cc, Hc, Wc)
    assert jnp.allclose(yc, yc_ref, atol=2e-3, rtol=2e-3), "mismatch vs reference (chunked)"

    print("KERNEL_OK")
</pallas_src>

<mosaic_0001>
module attributes {stable_mosaic.version = 11 : i64} {
  func.func @_conv_swiglu_kernel(%arg0: i32, %arg1: i32, %arg2: i32, %arg3: memref<1x4x256xf32, #tpu.memory_space<vmem>>, %arg4: memref<2x8x4xf32, #tpu.memory_space<vmem>>, %arg5: memref<2x8x1xf32, #tpu.memory_space<vmem>>, %arg6: memref<4x8xf32, #tpu.memory_space<vmem>>, %arg7: memref<4x1xf32, #tpu.memory_space<vmem>>, %arg8: memref<1x4x256xf32, #tpu.memory_space<vmem>>) attributes {dimension_semantics = [#tpu.dimension_semantics<parallel>, #tpu.dimension_semantics<parallel>, #tpu.dimension_semantics<arbitrary>], iteration_bounds = array<i64: 2, 1, 1>, scalar_prefetch = 0 : i64, scratch_operands = 0 : i64, tpu.core_type = #tpu.core_type<tc>, window_params = [{transform_indices = @transform_0, window_bounds = array<i64: 1, 4, 256>}, {pipeline_mode = #tpu.pipeline_mode<synchronous>, transform_indices = @transform_1, window_bounds = array<i64: 2, 8, 4>}, {pipeline_mode = #tpu.pipeline_mode<synchronous>, transform_indices = @transform_2, window_bounds = array<i64: 2, 8, 1>}, {pipeline_mode = #tpu.pipeline_mode<synchronous>, transform_indices = @transform_3, window_bounds = array<i64: 4, 8>}, {pipeline_mode = #tpu.pipeline_mode<synchronous>, transform_indices = @transform_4, window_bounds = array<i64: 4, 1>}, {transform_indices = @transform_5, window_bounds = array<i64: 1, 4, 256>}]} {
    %c0 = arith.constant 0 : index
    %c0_0 = arith.constant 0 : index
    %c0_1 = arith.constant 0 : index
    %0 = vector.load %arg3[%c0, %c0_0, %c0_1] : memref<1x4x256xf32, #tpu.memory_space<vmem>>, vector<1x4x256xf32>
    %1 = vector.shape_cast %0 : vector<1x4x256xf32> to vector<4x256xf32>
    %c0_2 = arith.constant 0 : index
    %c0_3 = arith.constant 0 : index
    %c0_4 = arith.constant 0 : index
    %2 = vector.load %arg4[%c0_2, %c0_3, %c0_4] : memref<2x8x4xf32, #tpu.memory_space<vmem>>, vector<1x8x4xf32>
    %3 = vector.shape_cast %2 : vector<1x8x4xf32> to vector<8x4xf32>
    %cst = arith.constant dense<0.000000e+00> : vector<8x256xf32>
    %4 = tpu.matmul %3, %1, %cst {dimension_numbers = #tpu.dot_dimension_numbers<[1], [0], [0], [1], [0, 0, 1, 1], [], []>} : vector<8x4xf32>, vector<4x256xf32>, vector<8x256xf32> -> vector<8x256xf32>
    %c0_5 = arith.constant 0 : index
    %c0_6 = arith.constant 0 : index
    %c0_7 = arith.constant 0 : index
    %5 = vector.load %arg5[%c0_5, %c0_6, %c0_7] : memref<2x8x1xf32, #tpu.memory_space<vmem>>, vector<1x8x1xf32>
    %6 = vector.shape_cast %5 : vector<1x8x1xf32> to vector<8x1xf32>
    %7 = vector.broadcast %6 : vector<8x1xf32> to vector<8x256xf32>
    %8 = arith.addf %4, %7 : vector<8x256xf32>
    %c1 = arith.constant 1 : index
    %c0_8 = arith.constant 0 : index
    %c0_9 = arith.constant 0 : index
    %9 = vector.load %arg4[%c1, %c0_8, %c0_9] : memref<2x8x4xf32, #tpu.memory_space<vmem>>, vector<1x8x4xf32>
    %10 = vector.shape_cast %9 : vector<1x8x4xf32> to vector<8x4xf32>
    %cst_10 = arith.constant dense<0.000000e+00> : vector<8x256xf32>
    %11 = tpu.matmul %10, %1, %cst_10 {dimension_numbers = #tpu.dot_dimension_numbers<[1], [0], [0], [1], [0, 0, 1, 1], [], []>} : vector<8x4xf32>, vector<4x256xf32>, vector<8x256xf32> -> vector<8x256xf32>
    %c1_11 = arith.constant 1 : index
    %c0_12 = arith.constant 0 : index
    %c0_13 = arith.constant 0 : index
    %12 = vector.load %arg5[%c1_11, %c0_12, %c0_13] : memref<2x8x1xf32, #tpu.memory_space<vmem>>, vector<1x8x1xf32>
    %13 = vector.shape_cast %12 : vector<1x8x1xf32> to vector<8x1xf32>
    %14 = vector.broadcast %13 : vector<8x1xf32> to vector<8x256xf32>
    %15 = arith.addf %11, %14 : vector<8x256xf32>
    %16 = arith.negf %8 : vector<8x256xf32>
    %17 = math.exp %16 : vector<8x256xf32>
    %cst_14 = arith.constant 1.000000e+00 : f32
    %18 = vector.broadcast %cst_14 : f32 to vector<8x256xf32>
    %19 = arith.addf %18, %17 : vector<8x256xf32>
    %20 = arith.divf %18, %19 : vector<8x256xf32>
    %21 = arith.mulf %8, %20 : vector<8x256xf32>
    %22 = arith.mulf %21, %15 : vector<8x256xf32>
    %c0_15 = arith.constant 0 : index
    %c0_16 = arith.constant 0 : index
    %23 = vector.load %arg6[%c0_15, %c0_16] : memref<4x8xf32, #tpu.memory_space<vmem>>, vector<4x8xf32>
    %cst_17 = arith.constant dense<0.000000e+00> : vector<4x256xf32>
    %24 = tpu.matmul %23, %22, %cst_17 {dimension_numbers = #tpu.dot_dimension_numbers<[1], [0], [0], [1], [0, 0, 1, 1], [], []>} : vector<4x8xf32>, vector<8x256xf32>, vector<4x256xf32> -> vector<4x256xf32>
    %c0_18 = arith.constant 0 : index
    %c0_19 = arith.constant 0 : index
    %25 = vector.load %arg7[%c0_18, %c0_19] : memref<4x1xf32, #tpu.memory_space<vmem>>, vector<4x1xf32>
    %26 = vector.broadcast %25 : vector<4x1xf32> to vector<4x256xf32>
    %27 = arith.addf %24, %26 : vector<4x256xf32>
    %c0_20 = arith.constant 0 : index
    %c0_21 = arith.constant 0 : index
    %c0_22 = arith.constant 0 : index
    %28 = vector.load %arg8[%c0_20, %c0_21, %c0_22] : memref<1x4x256xf32, #tpu.memory_space<vmem>>, vector<1x4x256xf32>
    %29 = vector.shape_cast %28 : vector<1x4x256xf32> to vector<4x256xf32>
    %30 = vector.shape_cast %27 : vector<4x256xf32> to vector<1x4x256xf32>
    tpu.vector_store %arg8[%c0_20, %c0_21, %c0_22], %30 {strides = array<i32>} : memref<1x4x256xf32, #tpu.memory_space<vmem>>, vector<1x4x256xf32>,
    return
  }
  func.func @transform_0(%arg0: i32, %arg1: i32, %arg2: i32) -> (i32, i32, i32) {
    %c0_i32 = arith.constant 0 : i32
    %c0_i32_0 = arith.constant 0 : i32
    return %arg0, %c0_i32, %arg1 : i32, i32, i32
  }
  func.func @transform_1(%arg0: i32, %arg1: i32, %arg2: i32) -> (i32, i32, i32) {
    %c0_i32 = arith.constant 0 : i32
    %c0_i32_0 = arith.constant 0 : i32
    %c0_i32_1 = arith.constant 0 : i32
    return %c0_i32, %arg2, %c0_i32_0 : i32, i32, i32
  }
  func.func @transform_2(%arg0: i32, %arg1: i32, %arg2: i32) -> (i32, i32, i32) {
    %c0_i32 = arith.constant 0 : i32
    %c0_i32_0 = arith.constant 0 : i32
    %c0_i32_1 = arith.constant 0 : i32
    return %c0_i32, %arg2, %c0_i32_0 : i32, i32, i32
  }
  func.func @transform_3(%arg0: i32, %arg1: i32, %arg2: i32) -> (i32, i32) {
    %c0_i32 = arith.constant 0 : i32
    %c0_i32_0 = arith.constant 0 : i32
    return %c0_i32, %arg2 : i32, i32
  }
  func.func @transform_4(%arg0: i32, %arg1: i32, %arg2: i32) -> (i32, i32) {
    %c0_i32 = arith.constant 0 : i32
    %c0_i32_0 = arith.constant 0 : i32
    %c0_i32_1 = arith.constant 0 : i32
    return %c0_i32, %c0_i32_0 : i32, i32
  }
  func.func @transform_5(%arg0: i32, %arg1: i32, %arg2: i32) -> (i32, i32, i32) {
    %c0_i32 = arith.constant 0 : i32
    %c0_i32_0 = arith.constant 0 : i32
    return %arg0, %c0_i32, %arg1 : i32, i32, i32
  }
}

module attributes {stable_mosaic.version = 11 : i64} {
  func.func @_conv_swiglu_kernel(%arg0: i32, %arg1: i32, %arg2: i32, %arg3: memref<1x4x256xf32, #tpu.memory_space<vmem>>, %arg4: memref<2x8x4xf32, #tpu.memory_space<vmem>>, %arg5: memref<2x8x1xf32, #tpu.memory_space<vmem>>, %arg6: memref<4x8xf32, #tpu.memory_space<vmem>>, %arg7: memref<4x1xf32, #tpu.memory_space<vmem>>, %arg8: memref<1x4x256xf32, #tpu.memory_space<vmem>>) attributes {dimension_semantics = [#tpu.dimension_semantics<parallel>, #tpu.dimension_semantics<parallel>, #tpu.dimension_semantics<arbitrary>], iteration_bounds = array<i64: 2, 1, 1>, scalar_prefetch = 0 : i64, scratch_operands = 0 : i64, tpu.core_type = #tpu.core_type<tc>, window_params = [{transform_indices = @transform_0, window_bounds = array<i64: 1, 4, 256>}, {transform_indices = @transform_1, window_bounds = array<i64: 2, 8, 4>}, {transform_indices = @transform_2, window_bounds = array<i64: 2, 8, 1>}, {transform_indices = @transform_3, window_bounds = array<i64: 4, 8>}, {pipeline_mode = #tpu.pipeline_mode<synchronous>, transform_indices = @transform_4, window_bounds = array<i64: 4, 1>}, {transform_indices = @transform_5, window_bounds = array<i64: 1, 4, 256>}]} {
    %c0 = arith.constant 0 : index
    %c0_0 = arith.constant 0 : index
    %c0_1 = arith.constant 0 : index
    %0 = vector.load %arg3[%c0, %c0_0, %c0_1] : memref<1x4x256xf32, #tpu.memory_space<vmem>>, vector<1x4x256xf32>
    %1 = vector.shape_cast %0 : vector<1x4x256xf32> to vector<4x256xf32>
    %c0_2 = arith.constant 0 : index
    %c0_3 = arith.constant 0 : index
    %c0_4 = arith.constant 0 : index
    %2 = vector.load %arg4[%c0_2, %c0_3, %c0_4] : memref<2x8x4xf32, #tpu.memory_space<vmem>>, vector<1x8x4xf32>
    %3 = vector.shape_cast %2 : vector<1x8x4xf32> to vector<8x4xf32>
    %cst = arith.constant dense<0.000000e+00> : vector<8x256xf32>
    %4 = tpu.matmul %3, %1, %cst {dimension_numbers = #tpu.dot_dimension_numbers<[1], [0], [0], [1], [0, 0, 1, 1], [], []>} : vector<8x4xf32>, vector<4x256xf32>, vector<8x256xf32> -> vector<8x256xf32>
    %c0_5 = arith.constant 0 : index
    %c0_6 = arith.constant 0 : index
    %c0_7 = arith.constant 0 : index
    %5 = vector.load %arg5[%c0_5, %c0_6, %c0_7] : memref<2x8x1xf32, #tpu.memory_space<vmem>>, vector<1x8x1xf32>
    %6 = vector.shape_cast %5 : vector<1x8x1xf32> to vector<8x1xf32>
    %7 = vector.broadcast %6 : vector<8x1xf32> to vector<8x256xf32>
    %8 = arith.addf %4, %7 : vector<8x256xf32>
    %c1 = arith.constant 1 : index
    %c0_8 = arith.constant 0 : index
    %c0_9 = arith.constant 0 : index
    %9 = vector.load %arg4[%c1, %c0_8, %c0_9] : memref<2x8x4xf32, #tpu.memory_space<vmem>>, vector<1x8x4xf32>
    %10 = vector.shape_cast %9 : vector<1x8x4xf32> to vector<8x4xf32>
    %cst_10 = arith.constant dense<0.000000e+00> : vector<8x256xf32>
    %11 = tpu.matmul %10, %1, %cst_10 {dimension_numbers = #tpu.dot_dimension_numbers<[1], [0], [0], [1], [0, 0, 1, 1], [], []>} : vector<8x4xf32>, vector<4x256xf32>, vector<8x256xf32> -> vector<8x256xf32>
    %c1_11 = arith.constant 1 : index
    %c0_12 = arith.constant 0 : index
    %c0_13 = arith.constant 0 : index
    %12 = vector.load %arg5[%c1_11, %c0_12, %c0_13] : memref<2x8x1xf32, #tpu.memory_space<vmem>>, vector<1x8x1xf32>
    %13 = vector.shape_cast %12 : vector<1x8x1xf32> to vector<8x1xf32>
    %14 = vector.broadcast %13 : vector<8x1xf32> to vector<8x256xf32>
    %15 = arith.addf %11, %14 : vector<8x256xf32>
    %16 = arith.negf %8 : vector<8x256xf32>
    %17 = math.exp %16 : vector<8x256xf32>
    %cst_14 = arith.constant 1.000000e+00 : f32
    %18 = vector.broadcast %cst_14 : f32 to vector<8x256xf32>
    %19 = arith.addf %18, %17 : vector<8x256xf32>
    %20 = arith.divf %18, %19 : vector<8x256xf32>
    %21 = arith.mulf %8, %20 : vector<8x256xf32>
    %22 = arith.mulf %21, %15 : vector<8x256xf32>
    %c0_15 = arith.constant 0 : index
    %c0_16 = arith.constant 0 : index
    %23 = vector.load %arg6[%c0_15, %c0_16] : memref<4x8xf32, #tpu.memory_space<vmem>>, vector<4x8xf32>
    %cst_17 = arith.constant dense<0.000000e+00> : vector<4x256xf32>
    %24 = tpu.matmul %23, %22, %cst_17 {dimension_numbers = #tpu.dot_dimension_numbers<[1], [0], [0], [1], [0, 0, 1, 1], [], []>} : vector<4x8xf32>, vector<8x256xf32>, vector<4x256xf32> -> vector<4x256xf32>
    %c0_18 = arith.constant 0 : index
    %c0_19 = arith.constant 0 : index
    %25 = vector.load %arg7[%c0_18, %c0_19] : memref<4x1xf32, #tpu.memory_space<vmem>>, vector<4x1xf32>
    %26 = vector.broadcast %25 : vector<4x1xf32> to vector<4x256xf32>
    %27 = arith.addf %24, %26 : vector<4x256xf32>
    %c0_20 = arith.constant 0 : index
    %c0_21 = arith.constant 0 : index
    %c0_22 = arith.constant 0 : index
    %28 = vector.load %arg8[%c0_20, %c0_21, %c0_22] : memref<1x4x256xf32, #tpu.memory_space<vmem>>, vector<1x4x256xf32>
    %29 = vector.shape_cast %28 : vector<1x4x256xf32> to vector<4x256xf32>
    %30 = vector.shape_cast %27 : vector<4x256xf32> to vector<1x4x256xf32>
    tpu.vector_store %arg8[%c0_20, %c0_21, %c0_22], %30 {strides = array<i32>} : memref<1x4x256xf32, #tpu.memory_space<vmem>>, vector<1x4x256xf32>,
    return
  }
  func.func @transform_0(%arg0: i32, %arg1: i32, %arg2: i32) -> (i32, i32, i32) {
    %c0_i32 = arith.constant 0 : i32
    %c0_i32_0 = arith.constant 0 : i32
    return %arg0, %c0_i32, %arg1 : i32, i32, i32
  }
  func.func @transform_1(%arg0: i32, %arg1: i32, %arg2: i32) -> (i32, i32, i32) {
    %c0_i32 = arith.constant 0 : i32
    %c0_i32_0 = arith.constant 0 : i32
    %c0_i32_1 = arith.constant 0 : i32
    return %c0_i32, %arg2, %c0_i32_0 : i32, i32, i32
  }
  func.func @transform_2(%arg0: i32, %arg1: i32, %arg2: i32) -> (i32, i32, i32) {
    %c0_i32 = arith.constant 0 : i32
    %c0_i32_0 = arith.constant 0 : i32
    %c0_i32_1 = arith.constant 0 : i32
    return %c0_i32, %arg2, %c0_i32_0 : i32, i32, i32
  }
  func.func @transform_3(%arg0: i32, %arg1: i32, %arg2: i32) -> (i32, i32) {
    %c0_i32 = arith.constant 0 : i32
    %c0_i32_0 = arith.constant 0 : i32
    return %c0_i32, %arg2 : i32, i32
  }
  func.func @transform_4(%arg0: i32, %arg1: i32, %arg2: i32) -> (i32, i32) {
    %c0_i32 = arith.constant 0 : i32
    %c0_i32_0 = arith.constant 0 : i32
    %c0_i32_1 = arith.constant 0 : i32
    return %c0_i32, %c0_i32_0 : i32, i32
  }
  func.func @transform_5(%arg0: i32, %arg1: i32, %arg2: i32) -> (i32, i32, i32) {
    %c0_i32 = arith.constant 0 : i32
    %c0_i32_0 = arith.constant 0 : i32
    return %arg0, %c0_i32, %arg1 : i32, i32, i32
  }
}

</mosaic_0001>

<llo_original>
// kernel: tpu_custom_call.1
$region0: #{tpu_custom_call.1}
  #allocation0 [shape = 'u32[]', space=smem, size = 0x4, offset = 0x4, fixed_abs, tag = 'smem constant byte address 0x4 - core index']
  #allocation1 [shape = 'u32[144,128]{1,0:T(1,128)}', space=vmem, size = 0x12000, scoped, tag = 'internal scratch']
  %s0 = inlined_call_operand.vmem [shape: f32[2,4,256], index: 0, kind: input, shape index: {}]
  %s1 = inlined_call_operand.vmem [shape: f32[2,8,4], index: 1, kind: input, shape index: {}]
  %s2 = inlined_call_operand.vmem [shape: f32[2,8,1], index: 2, kind: input, shape index: {}]
  %s3 = inlined_call_operand.vmem [shape: f32[4,8], index: 3, kind: input, shape index: {}]
  %s4 = inlined_call_operand.vmem [shape: f32[4,1], index: 4, kind: input, shape index: {}]
  %s5 = inlined_call_operand.hbm [shape: f32[2,4,256], index: 5, kind: output, shape index: {}]
  %s6 = sld [smem:[#allocation0]]
  $region53: #{tpu_custom_call.1} parent=0
    _
  %s8 = ssub.s32 1, %s6
  %s9 = scalar_select 0, %s8, %s6
  $region1: #{tpu_custom_call.1} parent=0
    #allocation2 [shape = 'u8[8192]{0}', space=vmem, size = 0x2000, scoped, tag = 'output window, operand 0']
    #allocation3 [shape = 's32[2]{0}', space=sflag, size = 0x8, scoped, tag = 'scoped memory for tpu_custom_call.1']
    %10 = vsyncpa [#allocation3], 0
    %s11 = scalar_lea.sflag [#allocation3], 1
    %12 = vsyncpa %s11, 0
    loop: start=0, step=1, limit=4
    $region2: #{tpu_custom_call.1} parent=1 // loop_pre_header
      _
    $region3: #{tpu_custom_call.1} parent=1 // loop_header
      %s14 = sphi 0, %s18
      %p15 = scmp.ge.s32.totalorder %s14, 4
      %s21 = sphi 0, %s40
      %s22 = sphi 0, %s36
      %s23 = sphi 0, %s32
      %s24 = sphi 0, %s21
      %s25 = sphi 0, %s22
      %s26 = sphi 0, %s23
      %s27 = sphi 0, %s24
      %s28 = sphi 0, %s25
      %s29 = sphi 0, %s26
      %s45 = sphi 0, %s47
      %s48 = sphi 0, %s45
      %s49 = sphi 0, %s48
      %s65 = sphi 0, %s49
      %s71 = sphi 0, %s73
      %s74 = sphi 0, %s71
      %s75 = sphi 0, %s74
      %s91 = sphi 0, %s75
      %s97 = sphi 0, %s99
      %s100 = sphi 0, %s97
      %s101 = sphi 0, %s100
      %s117 = sphi 0, %s101
      %s123 = sphi 0, %s125
      %s126 = sphi 0, %s123
      %s127 = sphi 0, %s126
      %s143 = sphi 0, %s127
      %s147 = sphi 0, %s147
      %s149 = sphi 0, %s147
      %s150 = sphi 0, %s149
      %s164 = sphi 0, %s150
      %s172 = sphi 0, %s174
      %s175 = sphi 0, %s172
      %s176 = sphi 0, %s175
      %s192 = sphi 0, %s176
    $region4: #{tpu_custom_call.1} parent=1 // loop_header_branch
      %17 = sbr.rel (%p15) target = $region8
    $region5: #{tpu_custom_call.1} parent=1 // loop_body
      %s19 = ssub.s32 %s14, 1
      %s20 = ssub.s32 %s14, 2
      %s30 = sadd.s32 1, %s23
      %p31 = scmp.ge.s32.totalorder %s30, 1
      %s32 = scalar_select %p31, 0, %s30
      %s33 = sadd.s32 1, %s22
      %s34 = scalar_select %p31, %s33, %s22
      %p35 = scmp.ge.s32.totalorder %s34, 1
      %s36 = scalar_select %p35, 0, %s34
      %s37 = sadd.s32 1, %s21
      %s38 = scalar_select %p35, %s37, %s21
      %p39 = scmp.ge.s32.totalorder %s38, 2
      %s40 = scalar_select %p39, 0, %s38
      %s41 = ssub.s32 %s21, %s40
      %s42 = ssub.s32 %s22, %s36
      %s43 = sor.u32 %s41, %s42
      %p44 = scmp.eq.s32.totalorder %s43, 0
      %s46 = sadd.s32 %s45, 1
      %s47 = scalar_select %p44, %s45, %s46
      %p50 = pneg %p44
      %p51 = scmp.eq.s32.totalorder %s14, 1
      %p52 = por %p50, %p51
      %p53 = scmp.ne.s32.totalorder %s45, %s48
      %p54 = scmp.eq.s32.totalorder %s14, 0
      %p55 = por %p53, %p54
      %p56 = scmp.ne.s32.totalorder %s45, %s48
      %p57 = scmp.eq.s32.totalorder %s19, 1
      %p58 = por %p56, %p57
      %p59 = scmp.ne.s32.totalorder %s48, %s49
      %p60 = scmp.eq.s32.totalorder %s19, 0
      %p61 = por %p59, %p60
      %p62 = scmp.ne.s32.totalorder %s48, %s49
      %p63 = scmp.eq.s32.totalorder %s20, 1
      %p64 = por %p62, %p63
      %p66 = scmp.ne.s32.totalorder %s49, %s65
      %p67 = scmp.eq.s32.totalorder %s20, 0
      %p68 = por %p66, %p67
      %s69 = ssub.s32 %s23, %s32
      %p70 = scmp.eq.s32.totalorder %s69, 0
      %s72 = sadd.s32 %s71, 1
      %s73 = scalar_select %p70, %s71, %s72
      %p76 = pneg %p70
      %p77 = scmp.eq.s32.totalorder %s14, 1
      %p78 = por %p76, %p77
      %p79 = scmp.ne.s32.totalorder %s71, %s74
      %p80 = scmp.eq.s32.totalorder %s14, 0
      %p81 = por %p79, %p80
      %p82 = scmp.ne.s32.totalorder %s71, %s74
      %p83 = scmp.eq.s32.totalorder %s19, 1
      %p84 = por %p82, %p83
      %p85 = scmp.ne.s32.totalorder %s74, %s75
      %p86 = scmp.eq.s32.totalorder %s19, 0
      %p87 = por %p85, %p86
      %p88 = scmp.ne.s32.totalorder %s74, %s75
      %p89 = scmp.eq.s32.totalorder %s20, 1
      %p90 = por %p88, %p89
      %p92 = scmp.ne.s32.totalorder %s75, %s91
      %p93 = scmp.eq.s32.totalorder %s20, 0
      %p94 = por %p92, %p93
      %s95 = ssub.s32 %s23, %s32
      %p96 = scmp.eq.s32.totalorder %s95, 0
      %s98 = sadd.s32 %s97, 1
      %s99 = scalar_select %p96, %s97, %s98
      %p102 = pneg %p96
      %p103 = scmp.eq.s32.totalorder %s14, 1
      %p104 = por %p102, %p103
      %p105 = scmp.ne.s32.totalorder %s97, %s100
      %p106 = scmp.eq.s32.totalorder %s14, 0
      %p107 = por %p105, %p106
      %p108 = scmp.ne.s32.totalorder %s97, %s100
      %p109 = scmp.eq.s32.totalorder %s19, 1
      %p110 = por %p108, %p109
      %p111 = scmp.ne.s32.totalorder %s100, %s101
      %p112 = scmp.eq.s32.totalorder %s19, 0
      %p113 = por %p111, %p112
      %p114 = scmp.ne.s32.totalorder %s100, %s101
      %p115 = scmp.eq.s32.totalorder %s20, 1
      %p116 = por %p114, %p115
      %p118 = scmp.ne.s32.totalorder %s101, %s117
      %p119 = scmp.eq.s32.totalorder %s20, 0
      %p120 = por %p118, %p119
      %s121 = ssub.s32 %s23, %s32
      %p122 = scmp.eq.s32.totalorder %s121, 0
      %s124 = sadd.s32 %s123, 1
      %s125 = scalar_select %p122, %s123, %s124
      %p128 = pneg %p122
      %p129 = scmp.eq.s32.totalorder %s14, 1
      %p130 = por %p128, %p129
      %p131 = scmp.ne.s32.totalorder %s123, %s126
      %p132 = scmp.eq.s32.totalorder %s14, 0
      %p133 = por %p131, %p132
      %p134 = scmp.ne.s32.totalorder %s123, %s126
      %p135 = scmp.eq.s32.totalorder %s19, 1
      %p136 = por %p134, %p135
      %p137 = scmp.ne.s32.totalorder %s126, %s127
      %p138 = scmp.eq.s32.totalorder %s19, 0
      %p139 = por %p137, %p138
      %p140 = scmp.ne.s32.totalorder %s126, %s127
      %p141 = scmp.eq.s32.totalorder %s20, 1
      %p142 = por %p140, %p141
      %p144 = scmp.ne.s32.totalorder %s127, %s143
      %p145 = scmp.eq.s32.totalorder %s20, 0
      %p146 = por %p144, %p145
      %s148 = sadd.s32 %s147, 1
      %p151 = scmp.eq.s32.totalorder %s14, 1
      %p152 = scmp.ne.s32.totalorder %s147, %s149
      %p153 = scmp.eq.s32.totalorder %s14, 0
      %p154 = por %p152, %p153
      %p155 = scmp.ne.s32.totalorder %s147, %s149
      %p156 = scmp.eq.s32.totalorder %s19, 1
      %p157 = por %p155, %p156
      %p158 = scmp.ne.s32.totalorder %s149, %s150
      %p159 = scmp.eq.s32.totalorder %s19, 0
      %p160 = por %p158, %p159
      %p161 = scmp.ne.s32.totalorder %s149, %s150
      %p162 = scmp.eq.s32.totalorder %s20, 1
      %p163 = por %p161, %p162
      %p165 = scmp.ne.s32.totalorder %s150, %s164
      %p166 = scmp.eq.s32.totalorder %s20, 0
      %p167 = por %p165, %p166
      %s168 = ssub.s32 %s21, %s40
      %s169 = ssub.s32 %s22, %s36
      %s170 = sor.u32 %s168, %s169
      %p171 = scmp.eq.s32.totalorder %s170, 0
      %s173 = sadd.s32 %s172, 1
      %s174 = scalar_select %p171, %s172, %s173
      %p177 = pneg %p171
      %p178 = scmp.eq.s32.totalorder %s14, 1
      %p179 = por %p177, %p178
      %p180 = scmp.ne.s32.totalorder %s172, %s175
      %p181 = scmp.eq.s32.totalorder %s14, 0
      %p182 = por %p180, %p181
      %p183 = scmp.ne.s32.totalorder %s172, %s175
      %p184 = scmp.eq.s32.totalorder %s19, 1
      %p185 = por %p183, %p184
      %p186 = scmp.ne.s32.totalorder %s175, %s176
      %p187 = scmp.eq.s32.totalorder %s19, 0
      %p188 = por %p186, %p187
      %p189 = scmp.ne.s32.totalorder %s175, %s176
      %p190 = scmp.eq.s32.totalorder %s20, 1
      %p191 = por %p189, %p190
      %p193 = scmp.ne.s32.totalorder %s176, %s192
      %p194 = scmp.eq.s32.totalorder %s20, 0
      %p195 = por %p193, %p194
      %p196 = scmp.le.s32.totalorder 1, %s14
      %p197 = scmp.lt.s32.totalorder %s14, 3
      %p198 = pnand %p196, %p197
      %p199 = pneg %p198
      // Predicated region
      $region9: #{tpu_custom_call.1} parent=5 // pred_check
        _
      $region10: #{tpu_custom_call.1} parent=5 // pred_check_branch
        %201 = sbr.rel (%p198) target = $region12
      $region11: #{tpu_custom_call.1} parent=5 // pred_region
        %s202 = ssub.s32 %s14, 1
        // Predicated region
        $region13: #{tpu_custom_call.1} parent=11 // pred_check
          %p203 = pneg %p87
        $region14: #{tpu_custom_call.1} parent=11 // pred_check_branch
          %205 = sbr.rel (%p203) target = $region16
        $region15: #{tpu_custom_call.1} parent=11 // pred_region
          %p206 = scmp.lt.s32.totalorder %s26, 0
          %s207 = scalar_select %p206, %s26, 0
          %s208 = smul.addr %s207, 8
          %s209 = scalar_lea.vmem %s1, %s208
        $region16: #{tpu_custom_call.1} parent=11 // pred_fallthru
          _
        // Predicated region
        $region17: #{tpu_custom_call.1} parent=11 // pred_check
          %p210 = pneg %p113
        $region18: #{tpu_custom_call.1} parent=11 // pred_check_branch
          %212 = sbr.rel (%p210) target = $region20
        $region19: #{tpu_custom_call.1} parent=11 // pred_region
          %p213 = scmp.lt.s32.totalorder %s26, 0
          %s214 = scalar_select %p213, %s26, 0
          %s215 = smul.addr %s214, 8
          %s216 = scalar_lea.vmem %s2, %s215
        $region20: #{tpu_custom_call.1} parent=11 // pred_fallthru
          _
        // Predicated region
        $region21: #{tpu_custom_call.1} parent=11 // pred_check
          %p217 = pneg %p139
        $region22: #{tpu_custom_call.1} parent=11 // pred_check_branch
          %219 = sbr.rel (%p217) target = $region24
        $region23: #{tpu_custom_call.1} parent=11 // pred_region
          %p220 = scmp.lt.s32.totalorder %s26, 0
          %s221 = scalar_select %p220, %s26, 0
          %s222 = smul.addr %s221, 4
          %s223 = scalar_lea.vmem %s3, %s222
        $region24: #{tpu_custom_call.1} parent=11 // pred_fallthru
          _
        // Predicated region
        $region25: #{tpu_custom_call.1} parent=11 // pred_check
          %p224 = pneg %p160
        $region26: #{tpu_custom_call.1} parent=11 // pred_check_branch
          %226 = sbr.rel (%p224) target = $region28
        $region27: #{tpu_custom_call.1} parent=11 // pred_region
          _
        $region28: #{tpu_custom_call.1} parent=11 // pred_fallthru
          _
      $region12: #{tpu_custom_call.1} parent=5 // pred_fallthru
        _
      %p227 = scmp.lt.s32.totalorder %s14, 2
      // Predicated region
      $region29: #{tpu_custom_call.1} parent=5 // pred_check
        %p228 = pneg %p227
      $region30: #{tpu_custom_call.1} parent=5 // pred_check_branch
        %230 = sbr.rel (%p228) target = $region32
      $region31: #{tpu_custom_call.1} parent=5 // pred_region
        // Predicated region
        $region33: #{tpu_custom_call.1} parent=31 // pred_check
          %p231 = pneg %p55
        $region34: #{tpu_custom_call.1} parent=31 // pred_check_branch
          %233 = sbr.rel (%p231) target = $region36
        $region35: #{tpu_custom_call.1} parent=31 // pred_region
          %s234 = smul.u32 2, %s22
          %p235 = scmp.lt.s32.totalorder %s21, 1
          %s236 = scalar_select %p235, %s21, 1
          %p237 = scmp.lt.s32.totalorder %s234, 1
          %s238 = scalar_select %p237, %s234, 1
          %s239 = smul.addr %s236, 2
          %s240 = sadd.s32 %s238, %s239
          %s241 = smul.addr %s240, 4
          %s242 = scalar_lea.vmem %s0, %s241
          %s243 = smul.u32 2, %s22
        $region36: #{tpu_custom_call.1} parent=31 // pred_fallthru
          _
      $region32: #{tpu_custom_call.1} parent=5 // pred_fallthru
        _
      %p244 = scmp.le.s32.totalorder 1, %s14
      %p245 = scmp.lt.s32.totalorder %s14, 3
      %p246 = pnand %p244, %p245
      %p247 = pneg %p246
      // Predicated region
      $region37: #{tpu_custom_call.1} parent=5 // pred_check
        _
      $region38: #{tpu_custom_call.1} parent=5 // pred_check_branch
        %249 = sbr.rel (%p246) target = $region40
      $region39: #{tpu_custom_call.1} parent=5 // pred_region
        %s250 = ssub.s32 %s14, 1
        %s251 = smul.u32 2, %s25
        %p252 = scmp.lt.s32.totalorder %s24, 1
        %s253 = scalar_select %p252, %s24, 1
        %p254 = scmp.lt.s32.totalorder %s251, 1
        %s255 = scalar_select %p254, %s251, 1
        %s256 = smul.addr %s253, 2
        %s257 = sadd.s32 %s255, %s256
        %s258 = smul.addr %s257, 4
        %s259 = scalar_lea.vmem %s0, %s258
        %p260 = pneg %p61
        %p261 = pneg %p58
        %p262 = scmp.lt.s32.totalorder %s26, 0
        %s263 = scalar_select %p262, %s26, 0
        %s264 = smul.addr %s263, 8
        %s265 = scalar_lea.vmem %s1, %s264
        %p266 = pneg %p87
        %p267 = pneg %p84
        %p268 = scmp.lt.s32.totalorder %s26, 0
        %s269 = scalar_select %p268, %s26, 0
        %s270 = smul.addr %s269, 8
        %s271 = scalar_lea.vmem %s2, %s270
        %p272 = pneg %p113
        %p273 = pneg %p110
        %p274 = scmp.lt.s32.totalorder %s26, 0
        %s275 = scalar_select %p274, %s26, 0
        %s276 = smul.addr %s275, 4
        %s277 = scalar_lea.vmem %s3, %s276
        %p278 = pneg %p139
        %p279 = pneg %p136
        %p280 = pneg %p160
        %p281 = pneg %p157
        %p282 = pneg %p188
        %p283 = pneg %p185
        %s284 = sand.u32 %s175, 1
        %s285 = scalar_lea.sflag [#allocation3], %s284
        %s286 = sand.u32 %s175, 1
        %s287 = smul.addr %s286, 8
        %s288 = scalar_lea.vmem [#allocation2], %s287
        %s289 = smul.u32 2, %s25
        %p290 = scmp.lt.s32.totalorder %s24, 1
        %s291 = scalar_select %p290, %s24, 1
        %p292 = scmp.lt.s32.totalorder %s289, 1
        %s293 = scalar_select %p292, %s289, 1
        %s294 = smul.addr %s291, 2
        %s295 = sadd.s32 %s293, %s294
        %s296 = smul.addr %s295, 4
        %s297 = scalar_lea.vmem %s0, %s296
        %s298 = smul.u32 2, %s25
        %p299 = scmp.lt.s32.totalorder %s26, 0
        %s300 = scalar_select %p299, %s26, 0
        %s301 = smul.addr %s300, 8
        %s302 = scalar_lea.vmem %s1, %s301
        %p303 = scmp.lt.s32.totalorder %s26, 0
        %s304 = scalar_select %p303, %s26, 0
        %s305 = smul.addr %s304, 8
        %s306 = scalar_lea.vmem %s2, %s305
        %p307 = scmp.lt.s32.totalorder %s26, 0
        %s308 = scalar_select %p307, %s26, 0
        %s309 = smul.addr %s308, 4
        %s310 = scalar_lea.vmem %s3, %s309
        %s311 = smul.u32 2, %s25
        %v312 = vld [vmem:[%s297] sm:$0xff]
        %v313 = vld [vmem:[%s302] sm:$0xff]
        %v314 = vld [vmem:[%s306] sm:$0xff]
        %316 = vset.pattern.permute.xlu0 0
        %317 = vperm.xlu0 %316, %v314
        %v318 = vpop.permute.xlu0 %317
        %v321 = vcombine.high %v312, %v312
        %vm322 = vcmask 31744
        %v324 = vsel %vm322, %v313, 0
        %vm326 = vcmask 1043456
        %v327 = vsel %vm326, %v312, 0
        %v329 = vsel %vm326, %v321, 0
        %331 = vmatprep.subr.mxu0 0.0
        %332 = vmatpush1.msra.mxu0 0.0
        %333 = vmatprep.subr.mxu0 0.0
        %334 = vmatpush1.msra.mxu0 0.0
        %335 = vmatprep.subr.mxu0 0.0
        %336 = vmatpush1.msra.mxu0 0.0
        %337 = vmatprep.subr.mxu0 0.0
        %338 = vmatpush1.msra.mxu0 0.0
        %339 = vmatprep.subr.mxu0 0.0
        %340 = vmatpush1.msra.mxu0 0.0
        %341 = vmatprep.subr.mxu0 0.0
        %342 = vmatpush1.msra.mxu0 0.0
        %343 = vmatprep.subr.mxu0 0.0
        %344 = vmatpush1.msra.mxu0 0.0
        %345 = vmatprep.subr.mxu0 0.0
        %346 = vmatpush1.msra.mxu0 0.0
        %347 = vmatprep.subr.mxu0 0.0
        %348 = vmatpush1.msra.mxu0 0.0
        %349 = vmatprep.subr.mxu0 0.0
        %350 = vmatpush1.msra.mxu0 0.0
        %351 = vmatprep.subr.mxu0 0.0
        %352 = vmatpush1.msra.mxu0 0.0
        %353 = vmatprep.subr.mxu0 0.0
        %354 = vmatpush1.msra.mxu0 0.0
        %355 = vmatprep.subr.mxu0 0.0
        %356 = vmatpush1.msra.mxu0 0.0
        %357 = vmatprep.subr.mxu0 0.0
        %358 = vmatpush1.msra.mxu0 0.0
        %359 = vmatprep.subr.mxu0 0.0
        %360 = vmatpush1.msra.mxu0 0.0
        %361 = vmatprep.subr.mxu0 %v329
        %362 = vmatpush1.msra.mxu0 %v327
        %363 = vmatprep.subr.mxu0 0.0
        %364 = vmatpush2.msra.mxu0 0.0
        %365 = vmatprep.subr.mxu0 0.0
        %366 = vmatpush2.msra.mxu0 0.0
        %367 = vmatprep.subr.mxu0 0.0
        %368 = vmatpush2.msra.mxu0 0.0
        %369 = vmatprep.subr.mxu0 0.0
        %370 = vmatpush2.msra.mxu0 0.0
        %371 = vmatprep.subr.mxu0 0.0
        %372 = vmatpush2.msra.mxu0 0.0
        %373 = vmatprep.subr.mxu0 0.0
        %374 = vmatpush2.msra.mxu0 0.0
        %375 = vmatprep.subr.mxu0 0.0
        %376 = vmatpush2.msra.mxu0 0.0
        %377 = vmatprep.subr.mxu0 0.0
        %378 = vmatpush2.msra.mxu0 0.0
        %379 = vmatprep.subr.mxu0 0.0
        %380 = vmatpush2.msra.mxu0 0.0
        %381 = vmatprep.subr.mxu0 0.0
        %382 = vmatpush2.msra.mxu0 0.0
        %383 = vmatprep.subr.mxu0 0.0
        %384 = vmatpush2.msra.mxu0 0.0
        %385 = vmatprep.subr.mxu0 0.0
        %386 = vmatpush2.msra.mxu0 0.0
        %387 = vmatprep.subr.mxu0 0.0
        %388 = vmatpush2.msra.mxu0 0.0
        %389 = vmatprep.subr.mxu0 0.0
        %390 = vmatpush2.msra.mxu0 0.0
        %391 = vmatprep.subr.mxu0 0.0
        %392 = vmatpush2.msra.mxu0 0.0
        %393 = vmatprep.subr.mxu0 0.0
        %394 = vmatpush2.msra.mxu0 0.0
        %395 = vmatprep.mubr.f32.mxu0 0.0
        %396 = vmatmul.mubr.f32.gmra.mxu0 %v324
        %v397 = vpop.f32.mrf.mxu0
        %v398 = vadd.f32 %v318, %v397
        %v399 = vpop.f32.mrf.mxu0
        %v400 = vadd.f32 %v318, %v399
        %401 = vdwg.mxu0
        %s402 = scalar_lea.vmem %s302, 8
        %v403 = vld [vmem:[%s402] sm:$0xff]
        %s404 = scalar_lea.vmem %s306, 8
        %v405 = vld [vmem:[%s404] sm:$0xff]
        %407 = vset.pattern.permute.xlu0 0
        %408 = vperm.xlu0 %407, %v405
        %v409 = vpop.permute.xlu0 %408
        %v412 = vsel %vm322, %v403, 0
        %414 = vmatprep.subr.mxu0 0.0
        %415 = vmatpush1.msra.mxu0 0.0
        %416 = vmatprep.subr.mxu0 0.0
        %417 = vmatpush1.msra.mxu0 0.0
        %418 = vmatprep.subr.mxu0 0.0
        %419 = vmatpush1.msra.mxu0 0.0
        %420 = vmatprep.subr.mxu0 0.0
        %421 = vmatpush1.msra.mxu0 0.0
        %422 = vmatprep.subr.mxu0 0.0
        %423 = vmatpush1.msra.mxu0 0.0
        %424 = vmatprep.subr.mxu0 0.0
        %425 = vmatpush1.msra.mxu0 0.0
        %426 = vmatprep.subr.mxu0 0.0
        %427 = vmatpush1.msra.mxu0 0.0
        %428 = vmatprep.subr.mxu0 0.0
        %429 = vmatpush1.msra.mxu0 0.0
        %430 = vmatprep.subr.mxu0 0.0
        %431 = vmatpush1.msra.mxu0 0.0
        %432 = vmatprep.subr.mxu0 0.0
        %433 = vmatpush1.msra.mxu0 0.0
        %434 = vmatprep.subr.mxu0 0.0
        %435 = vmatpush1.msra.mxu0 0.0
        %436 = vmatprep.subr.mxu0 0.0
        %437 = vmatpush1.msra.mxu0 0.0
        %438 = vmatprep.subr.mxu0 0.0
        %439 = vmatpush1.msra.mxu0 0.0
        %440 = vmatprep.subr.mxu0 0.0
        %441 = vmatpush1.msra.mxu0 0.0
        %442 = vmatprep.subr.mxu0 0.0
        %443 = vmatpush1.msra.mxu0 0.0
        %444 = vmatprep.subr.mxu0 %v329
        %445 = vmatpush1.msra.mxu0 %v327
        %446 = vmatprep.subr.mxu0 0.0
        %447 = vmatpush2.msra.mxu0 0.0
        %448 = vmatprep.subr.mxu0 0.0
        %449 = vmatpush2.msra.mxu0 0.0
        %450 = vmatprep.subr.mxu0 0.0
        %451 = vmatpush2.msra.mxu0 0.0
        %452 = vmatprep.subr.mxu0 0.0
        %453 = vmatpush2.msra.mxu0 0.0
        %454 = vmatprep.subr.mxu0 0.0
        %455 = vmatpush2.msra.mxu0 0.0
        %456 = vmatprep.subr.mxu0 0.0
        %457 = vmatpush2.msra.mxu0 0.0
        %458 = vmatprep.subr.mxu0 0.0
        %459 = vmatpush2.msra.mxu0 0.0
        %460 = vmatprep.subr.mxu0 0.0
        %461 = vmatpush2.msra.mxu0 0.0
        %462 = vmatprep.subr.mxu0 0.0
        %463 = vmatpush2.msra.mxu0 0.0
        %464 = vmatprep.subr.mxu0 0.0
        %465 = vmatpush2.msra.mxu0 0.0
        %466 = vmatprep.subr.mxu0 0.0
        %467 = vmatpush2.msra.mxu0 0.0
        %468 = vmatprep.subr.mxu0 0.0
        %469 = vmatpush2.msra.mxu0 0.0
        %470 = vmatprep.subr.mxu0 0.0
        %471 = vmatpush2.msra.mxu0 0.0
        %472 = vmatprep.subr.mxu0 0.0
        %473 = vmatpush2.msra.mxu0 0.0
        %474 = vmatprep.subr.mxu0 0.0
        %475 = vmatpush2.msra.mxu0 0.0
        %476 = vmatprep.subr.mxu0 0.0
        %477 = vmatpush2.msra.mxu0 0.0
        %478 = vmatprep.mubr.f32.mxu0 0.0
        %479 = vmatmul.mubr.f32.gmra.mxu0 %v412
        %v480 = vpop.f32.mrf.mxu0
        %v481 = vadd.f32 %v409, %v480
        %v482 = vpop.f32.mrf.mxu0
        %v483 = vadd.f32 %v409, %v482
        %484 = vdwg.mxu0
        %v485 = vxor.u32 %v398, 2147483648
        %v486 = vxor.u32 %v400, 2147483648
        %v487 = vmul.f32 %v485, 1.442695
        %v488 = vpow.pop %v487
        %v489 = vmul.f32 %v486, 1.442695
        %v490 = vpow.pop %v489
        %v491 = vadd.f32 %v488, 1.0
        %v492 = vadd.f32 %v490, 1.0
        %v493 = vrcp.pop %v491
        %v494 = vmul.f32 1.0, %v493
        %v495 = vrcp.pop %v492
        %v496 = vmul.f32 1.0, %v495
        %v497 = vmul.f32 %v398, %v494
        %v498 = vmul.f32 %v400, %v496
        %v499 = vmul.f32 %v497, %v481
        %v500 = vmul.f32 %v498, %v483
        %v501 = vld [vmem:[%s310] sm:$0xf]
        %v502 = vld [vmem:[%s4] sm:$0xf]
        %504 = vset.pattern.permute.xlu0 0
        %505 = vperm.xlu0 %504, %v502
        %v506 = vpop.permute.xlu0 %505
        %vm508 = vcmask 64512
        %v510 = vsel %vm508, %v501, 0
        %512 = vmatprep.subr.mxu0 0.0
        %513 = vmatpush1.msra.mxu0 0.0
        %514 = vmatprep.subr.mxu0 0.0
        %515 = vmatpush1.msra.mxu0 0.0
        %516 = vmatprep.subr.mxu0 0.0
        %517 = vmatpush1.msra.mxu0 0.0
        %518 = vmatprep.subr.mxu0 0.0
        %519 = vmatpush1.msra.mxu0 0.0
        %520 = vmatprep.subr.mxu0 0.0
        %521 = vmatpush1.msra.mxu0 0.0
        %522 = vmatprep.subr.mxu0 0.0
        %523 = vmatpush1.msra.mxu0 0.0
        %524 = vmatprep.subr.mxu0 0.0
        %525 = vmatpush1.msra.mxu0 0.0
        %526 = vmatprep.subr.mxu0 0.0
        %527 = vmatpush1.msra.mxu0 0.0
        %528 = vmatprep.subr.mxu0 0.0
        %529 = vmatpush1.msra.mxu0 0.0
        %530 = vmatprep.subr.mxu0 0.0
        %531 = vmatpush1.msra.mxu0 0.0
        %532 = vmatprep.subr.mxu0 0.0
        %533 = vmatpush1.msra.mxu0 0.0
        %534 = vmatprep.subr.mxu0 0.0
        %535 = vmatpush1.msra.mxu0 0.0
        %536 = vmatprep.subr.mxu0 0.0
        %537 = vmatpush1.msra.mxu0 0.0
        %538 = vmatprep.subr.mxu0 0.0
        %539 = vmatpush1.msra.mxu0 0.0
        %540 = vmatprep.subr.mxu0 0.0
        %541 = vmatpush1.msra.mxu0 0.0
        %542 = vmatprep.subr.mxu0 %v500
        %543 = vmatpush1.msra.mxu0 %v499
        %544 = vmatprep.subr.mxu0 0.0
        %545 = vmatpush2.msra.mxu0 0.0
        %546 = vmatprep.subr.mxu0 0.0
        %547 = vmatpush2.msra.mxu0 0.0
        %548 = vmatprep.subr.mxu0 0.0
        %549 = vmatpush2.msra.mxu0 0.0
        %550 = vmatprep.subr.mxu0 0.0
        %551 = vmatpush2.msra.mxu0 0.0
        %552 = vmatprep.subr.mxu0 0.0
        %553 = vmatpush2.msra.mxu0 0.0
        %554 = vmatprep.subr.mxu0 0.0
        %555 = vmatpush2.msra.mxu0 0.0
        %556 = vmatprep.subr.mxu0 0.0
        %557 = vmatpush2.msra.mxu0 0.0
        %558 = vmatprep.subr.mxu0 0.0
        %559 = vmatpush2.msra.mxu0 0.0
        %560 = vmatprep.subr.mxu0 0.0
        %561 = vmatpush2.msra.mxu0 0.0
        %562 = vmatprep.subr.mxu0 0.0
        %563 = vmatpush2.msra.mxu0 0.0
        %564 = vmatprep.subr.mxu0 0.0
        %565 = vmatpush2.msra.mxu0 0.0
        %566 = vmatprep.subr.mxu0 0.0
        %567 = vmatpush2.msra.mxu0 0.0
        %568 = vmatprep.subr.mxu0 0.0
        %569 = vmatpush2.msra.mxu0 0.0
        %570 = vmatprep.subr.mxu0 0.0
        %571 = vmatpush2.msra.mxu0 0.0
        %572 = vmatprep.subr.mxu0 0.0
        %573 = vmatpush2.msra.mxu0 0.0
        %574 = vmatprep.subr.mxu0 0.0
        %575 = vmatpush2.msra.mxu0 0.0
        %576 = vmatprep.mubr.f32.mxu0 0.0
        %577 = vmatmul.mubr.f32.gmra.mxu0 %v510
        %v578 = vpop.f32.mrf.mxu0
        %v579 = vadd.f32 %v506, %v578
        %v580 = vpop.f32.mrf.mxu0
        %v581 = vadd.f32 %v506, %v580
        %582 = vdwg.mxu0
        %v585 = vcombine.low %v579, %v581
        %587 = vst [vmem:[%s288] sm:$0xff] %v585
        %s588 = sand.u32 %s175, 1
        %s589 = scalar_lea.sflag [#allocation3], %s588
        %s590 = sand.u32 %s175, 1
        %s591 = smul.addr %s590, 8
        %s592 = scalar_lea.vmem [#allocation2], %s591
        // Predicated region
        $region41: #{tpu_custom_call.1} parent=39 // pred_check
          %p593 = pneg %p185
        $region42: #{tpu_custom_call.1} parent=39 // pred_check_branch
          %595 = sbr.rel (%p593) target = $region44
        $region43: #{tpu_custom_call.1} parent=39 // pred_region
          %s596 = smul.u32 2, %s25
          %s598 = ssub.s32 128, 128
          %599 = vsyncadd %s589, %s598
          %s600 = smul.addr %s24, 2
          %s601 = sadd.s32 %s596, %s600
          %s602 = smul.addr %s601, 64
          %s603 = scalar_lea.hbm %s5, %s602
          %s605 = sshll.u32 %s592, 4
          %s606 = int_to_ptr.vmem [resolvable:$true] %s605
          %608 = dma.vmem_to_hbm [thread:$0]  %s606, 128, %s603, %s589
        $region44: #{tpu_custom_call.1} parent=39 // pred_fallthru
          _
      $region40: #{tpu_custom_call.1} parent=5 // pred_fallthru
        _
      %p609 = scmp.le.s32.totalorder 2, %s14
      // Predicated region
      $region45: #{tpu_custom_call.1} parent=5 // pred_check
        %p610 = pneg %p609
      $region46: #{tpu_custom_call.1} parent=5 // pred_check_branch
        %612 = sbr.rel (%p610) target = $region48
      $region47: #{tpu_custom_call.1} parent=5 // pred_region
        %s613 = ssub.s32 %s14, 2
        // Predicated region
        $region49: #{tpu_custom_call.1} parent=47 // pred_check
          %p614 = pneg %p191
        $region50: #{tpu_custom_call.1} parent=47 // pred_check_branch
          %616 = sbr.rel (%p614) target = $region52
        $region51: #{tpu_custom_call.1} parent=47 // pred_region
          %s617 = sand.u32 %s176, 1
          %s618 = scalar_lea.sflag [#allocation3], %s617
          %s619 = sand.u32 %s176, 1
          %s620 = smul.addr %s619, 8
          %s621 = scalar_lea.vmem [#allocation2], %s620
          %622 = dma.done %s618, 128
        $region52: #{tpu_custom_call.1} parent=47 // pred_fallthru
          _
      $region48: #{tpu_custom_call.1} parent=5 // pred_fallthru
        _
    $region6: #{tpu_custom_call.1} parent=1 // loop_footer
      %s18 = sadd.s32 1, %s14
    $region7: #{tpu_custom_call.1} parent=1 // loop_footer_branch
      %13 = sbr.rel target = $region3
    $region8: #{tpu_custom_call.1} parent=1 // loop_exit
      _
    %623 = vsyncpa [#allocation3], 1
    %s624 = scalar_lea.sflag [#allocation3], 1
    %625 = vsyncpa %s624, 1

// kernel: tpu_custom_call.1
$region0: #{tpu_custom_call.1}
  #allocation0 [shape = 'u32[]', space=smem, size = 0x4, offset = 0x4, fixed_abs, tag = 'smem constant byte address 0x4 - core index']
  #allocation1 [shape = 'u32[144,128]{1,0:T(1,128)}', space=vmem, size = 0x12000, scoped, tag = 'internal scratch']
  %s0 = inlined_call_operand.vmem [shape: f32[2,4,256], index: 0, kind: input, shape index: {}]
  %s1 = inlined_call_operand.vmem [shape: f32[2,8,4], index: 1, kind: input, shape index: {}]
  %s2 = inlined_call_operand.vmem [shape: f32[2,8,1], index: 2, kind: input, shape index: {}]
  %s3 = inlined_call_operand.vmem [shape: f32[4,8], index: 3, kind: input, shape index: {}]
  %s4 = inlined_call_operand.vmem [shape: f32[4,1], index: 4, kind: input, shape index: {}]
  %s5 = inlined_call_operand.hbm [shape: f32[2,4,256], index: 5, kind: output, shape index: {}]
  %s6 = sld [smem:[#allocation0]]
  $region53: #{tpu_custom_call.1} parent=0
    _
  %s8 = ssub.s32 1, %s6
  %s9 = scalar_select 0, %s8, %s6
  $region1: #{tpu_custom_call.1} parent=0
    #allocation2 [shape = 'u8[8192]{0}', space=vmem, size = 0x2000, scoped, tag = 'output window, operand 0']
    #allocation3 [shape = 's32[2]{0}', space=sflag, size = 0x8, scoped, tag = 'scoped memory for tpu_custom_call.1']
    %10 = vsyncpa [#allocation3], 0
    %s11 = scalar_lea.sflag [#allocation3], 1
    %12 = vsyncpa %s11, 0
    loop: start=0, step=1, limit=4
    $region2: #{tpu_custom_call.1} parent=1 // loop_pre_header
      _
    $region3: #{tpu_custom_call.1} parent=1 // loop_header
      %s14 = sphi 0, %s18
      %p15 = scmp.ge.s32.totalorder %s14, 4
      %s21 = sphi 0, %s40
      %s22 = sphi 0, %s36
      %s23 = sphi 0, %s32
      %s24 = sphi 0, %s21
      %s25 = sphi 0, %s22
      %s26 = sphi 0, %s23
      %s27 = sphi 0, %s24
      %s28 = sphi 0, %s25
      %s29 = sphi 0, %s26
      %s45 = sphi 0, %s47
      %s48 = sphi 0, %s45
      %s49 = sphi 0, %s48
      %s65 = sphi 0, %s49
      %s71 = sphi 0, %s73
      %s74 = sphi 0, %s71
      %s75 = sphi 0, %s74
      %s91 = sphi 0, %s75
      %s97 = sphi 0, %s99
      %s100 = sphi 0, %s97
      %s101 = sphi 0, %s100
      %s117 = sphi 0, %s101
      %s123 = sphi 0, %s125
      %s126 = sphi 0, %s123
      %s127 = sphi 0, %s126
      %s143 = sphi 0, %s127
      %s147 = sphi 0, %s147
      %s149 = sphi 0, %s147
      %s150 = sphi 0, %s149
      %s164 = sphi 0, %s150
      %s172 = sphi 0, %s174
      %s175 = sphi 0, %s172
      %s176 = sphi 0, %s175
      %s192 = sphi 0, %s176
    $region4: #{tpu_custom_call.1} parent=1 // loop_header_branch
      %17 = sbr.rel (%p15) target = $region8
    $region5: #{tpu_custom_call.1} parent=1 // loop_body
      %s19 = ssub.s32 %s14, 1
      %s20 = ssub.s32 %s14, 2
      %s30 = sadd.s32 1, %s23
      %p31 = scmp.ge.s32.totalorder %s30, 1
      %s32 = scalar_select %p31, 0, %s30
      %s33 = sadd.s32 1, %s22
      %s34 = scalar_select %p31, %s33, %s22
      %p35 = scmp.ge.s32.totalorder %s34, 1
      %s36 = scalar_select %p35, 0, %s34
      %s37 = sadd.s32 1, %s21
      %s38 = scalar_select %p35, %s37, %s21
      %p39 = scmp.ge.s32.totalorder %s38, 2
      %s40 = scalar_select %p39, 0, %s38
      %s41 = ssub.s32 %s21, %s40
      %s42 = ssub.s32 %s22, %s36
      %s43 = sor.u32 %s41, %s42
      %p44 = scmp.eq.s32.totalorder %s43, 0
      %s46 = sadd.s32 %s45, 1
      %s47 = scalar_select %p44, %s45, %s46
      %p50 = pneg %p44
      %p51 = scmp.eq.s32.totalorder %s14, 1
      %p52 = por %p50, %p51
      %p53 = scmp.ne.s32.totalorder %s45, %s48
      %p54 = scmp.eq.s32.totalorder %s14, 0
      %p55 = por %p53, %p54
      %p56 = scmp.ne.s32.totalorder %s45, %s48
      %p57 = scmp.eq.s32.totalorder %s19, 1
      %p58 = por %p56, %p57
      %p59 = scmp.ne.s32.totalorder %s48, %s49
      %p60 = scmp.eq.s32.totalorder %s19, 0
      %p61 = por %p59, %p60
      %p62 = scmp.ne.s32.totalorder %s48, %s49
      %p63 = scmp.eq.s32.totalorder %s20, 1
      %p64 = por %p62, %p63
      %p66 = scmp.ne.s32.totalorder %s49, %s65
      %p67 = scmp.eq.s32.totalorder %s20, 0
      %p68 = por %p66, %p67
      %s69 = ssub.s32 %s23, %s32
      %p70 = scmp.eq.s32.totalorder %s69, 0
      %s72 = sadd.s32 %s71, 1
      %s73 = scalar_select %p70, %s71, %s72
      %p76 = pneg %p70
      %p77 = scmp.eq.s32.totalorder %s14, 1
      %p78 = por %p76, %p77
      %p79 = scmp.ne.s32.totalorder %s71, %s74
      %p80 = scmp.eq.s32.totalorder %s14, 0
      %p81 = por %p79, %p80
      %p82 = scmp.ne.s32.totalorder %s71, %s74
      %p83 = scmp.eq.s32.totalorder %s19, 1
      %p84 = por %p82, %p83
      %p85 = scmp.ne.s32.totalorder %s74, %s75
      %p86 = scmp.eq.s32.totalorder %s19, 0
      %p87 = por %p85, %p86
      %p88 = scmp.ne.s32.totalorder %s74, %s75
      %p89 = scmp.eq.s32.totalorder %s20, 1
      %p90 = por %p88, %p89
      %p92 = scmp.ne.s32.totalorder %s75, %s91
      %p93 = scmp.eq.s32.totalorder %s20, 0
      %p94 = por %p92, %p93
      %s95 = ssub.s32 %s23, %s32
      %p96 = scmp.eq.s32.totalorder %s95, 0
      %s98 = sadd.s32 %s97, 1
      %s99 = scalar_select %p96, %s97, %s98
      %p102 = pneg %p96
      %p103 = scmp.eq.s32.totalorder %s14, 1
      %p104 = por %p102, %p103
      %p105 = scmp.ne.s32.totalorder %s97, %s100
      %p106 = scmp.eq.s32.totalorder %s14, 0
      %p107 = por %p105, %p106
      %p108 = scmp.ne.s32.totalorder %s97, %s100
      %p109 = scmp.eq.s32.totalorder %s19, 1
      %p110 = por %p108, %p109
      %p111 = scmp.ne.s32.totalorder %s100, %s101
      %p112 = scmp.eq.s32.totalorder %s19, 0
      %p113 = por %p111, %p112
      %p114 = scmp.ne.s32.totalorder %s100, %s101
      %p115 = scmp.eq.s32.totalorder %s20, 1
      %p116 = por %p114, %p115
      %p118 = scmp.ne.s32.totalorder %s101, %s117
      %p119 = scmp.eq.s32.totalorder %s20, 0
      %p120 = por %p118, %p119
      %s121 = ssub.s32 %s23, %s32
      %p122 = scmp.eq.s32.totalorder %s121, 0
      %s124 = sadd.s32 %s123, 1
      %s125 = scalar_select %p122, %s123, %s124
      %p128 = pneg %p122
      %p129 = scmp.eq.s32.totalorder %s14, 1
      %p130 = por %p128, %p129
      %p131 = scmp.ne.s32.totalorder %s123, %s126
      %p132 = scmp.eq.s32.totalorder %s14, 0
      %p133 = por %p131, %p132
      %p134 = scmp.ne.s32.totalorder %s123, %s126
      %p135 = scmp.eq.s32.totalorder %s19, 1
      %p136 = por %p134, %p135
      %p137 = scmp.ne.s32.totalorder %s126, %s127
      %p138 = scmp.eq.s32.totalorder %s19, 0
      %p139 = por %p137, %p138
      %p140 = scmp.ne.s32.totalorder %s126, %s127
      %p141 = scmp.eq.s32.totalorder %s20, 1
      %p142 = por %p140, %p141
      %p144 = scmp.ne.s32.totalorder %s127, %s143
      %p145 = scmp.eq.s32.totalorder %s20, 0
      %p146 = por %p144, %p145
      %s148 = sadd.s32 %s147, 1
      %p151 = scmp.eq.s32.totalorder %s14, 1
      %p152 = scmp.ne.s32.totalorder %s147, %s149
      %p153 = scmp.eq.s32.totalorder %s14, 0
      %p154 = por %p152, %p153
      %p155 = scmp.ne.s32.totalorder %s147, %s149
      %p156 = scmp.eq.s32.totalorder %s19, 1
      %p157 = por %p155, %p156
      %p158 = scmp.ne.s32.totalorder %s149, %s150
      %p159 = scmp.eq.s32.totalorder %s19, 0
      %p160 = por %p158, %p159
      %p161 = scmp.ne.s32.totalorder %s149, %s150
      %p162 = scmp.eq.s32.totalorder %s20, 1
      %p163 = por %p161, %p162
      %p165 = scmp.ne.s32.totalorder %s150, %s164
      %p166 = scmp.eq.s32.totalorder %s20, 0
      %p167 = por %p165, %p166
      %s168 = ssub.s32 %s21, %s40
      %s169 = ssub.s32 %s22, %s36
      %s170 = sor.u32 %s168, %s169
      %p171 = scmp.eq.s32.totalorder %s170, 0
      %s173 = sadd.s32 %s172, 1
      %s174 = scalar_select %p171, %s172, %s173
      %p177 = pneg %p171
      %p178 = scmp.eq.s32.totalorder %s14, 1
      %p179 = por %p177, %p178
      %p180 = scmp.ne.s32.totalorder %s172, %s175
      %p181 = scmp.eq.s32.totalorder %s14, 0
      %p182 = por %p180, %p181
      %p183 = scmp.ne.s32.totalorder %s172, %s175
      %p184 = scmp.eq.s32.totalorder %s19, 1
      %p185 = por %p183, %p184
      %p186 = scmp.ne.s32.totalorder %s175, %s176
      %p187 = scmp.eq.s32.totalorder %s19, 0
      %p188 = por %p186, %p187
      %p189 = scmp.ne.s32.totalorder %s175, %s176
      %p190 = scmp.eq.s32.totalorder %s20, 1
      %p191 = por %p189, %p190
      %p193 = scmp.ne.s32.totalorder %s176, %s192
      %p194 = scmp.eq.s32.totalorder %s20, 0
      %p195 = por %p193, %p194
      %p196 = scmp.le.s32.totalorder 1, %s14
      %p197 = scmp.lt.s32.totalorder %s14, 3
      %p198 = pnand %p196, %p197
      %p199 = pneg %p198
      // Predicated region
      $region9: #{tpu_custom_call.1} parent=5 // pred_check
        _
      $region10: #{tpu_custom_call.1} parent=5 // pred_check_branch
        %201 = sbr.rel (%p198) target = $region12
      $region11: #{tpu_custom_call.1} parent=5 // pred_region
        %s202 = ssub.s32 %s14, 1
        // Predicated region
        $region13: #{tpu_custom_call.1} parent=11 // pred_check
          %p203 = pneg %p87
        $region14: #{tpu_custom_call.1} parent=11 // pred_check_branch
          %205 = sbr.rel (%p203) target = $region16
        $region15: #{tpu_custom_call.1} parent=11 // pred_region
          %p206 = scmp.lt.s32.totalorder %s26, 0
          %s207 = scalar_select %p206, %s26, 0
          %s208 = smul.addr %s207, 8
          %s209 = scalar_lea.vmem %s1, %s208
        $region16: #{tpu_custom_call.1} parent=11 // pred_fallthru
          _
        // Predicated region
        $region17: #{tpu_custom_call.1} parent=11 // pred_check
          %p210 = pneg %p113
        $region18: #{tpu_custom_call.1} parent=11 // pred_check_branch
          %212 = sbr.rel (%p210) target = $region20
        $region19: #{tpu_custom_call.1} parent=11 // pred_region
          %p213 = scmp.lt.s32.totalorder %s26, 0
          %s214 = scalar_select %p213, %s26, 0
          %s215 = smul.addr %s214, 8
          %s216 = scalar_lea.vmem %s2, %s215
        $region20: #{tpu_custom_call.1} parent=11 // pred_fallthru
          _
        // Predicated region
        $region21: #{tpu_custom_call.1} parent=11 // pred_check
          %p217 = pneg %p139
        $region22: #{tpu_custom_call.1} parent=11 // pred_check_branch
          %219 = sbr.rel (%p217) target = $region24
        $region23: #{tpu_custom_call.1} parent=11 // pred_region
          %p220 = scmp.lt.s32.totalorder %s26, 0
          %s221 = scalar_select %p220, %s26, 0
          %s222 = smul.addr %s221, 4
          %s223 = scalar_lea.vmem %s3, %s222
        $region24: #{tpu_custom_call.1} parent=11 // pred_fallthru
          _
        // Predicated region
        $region25: #{tpu_custom_call.1} parent=11 // pred_check
          %p224 = pneg %p160
        $region26: #{tpu_custom_call.1} parent=11 // pred_check_branch
          %226 = sbr.rel (%p224) target = $region28
        $region27: #{tpu_custom_call.1} parent=11 // pred_region
          _
        $region28: #{tpu_custom_call.1} parent=11 // pred_fallthru
          _
      $region12: #{tpu_custom_call.1} parent=5 // pred_fallthru
        _
      %p227 = scmp.lt.s32.totalorder %s14, 2
      // Predicated region
      $region29: #{tpu_custom_call.1} parent=5 // pred_check
        %p228 = pneg %p227
      $region30: #{tpu_custom_call.1} parent=5 // pred_check_branch
        %230 = sbr.rel (%p228) target = $region32
      $region31: #{tpu_custom_call.1} parent=5 // pred_region
        // Predicated region
        $region33: #{tpu_custom_call.1} parent=31 // pred_check
          %p231 = pneg %p55
        $region34: #{tpu_custom_call.1} parent=31 // pred_check_branch
          %233 = sbr.rel (%p231) target = $region36
        $region35: #{tpu_custom_call.1} parent=31 // pred_region
          %s234 = smul.u32 2, %s22
          %p235 = scmp.lt.s32.totalorder %s21, 1
          %s236 = scalar_select %p235, %s21, 1
          %p237 = scmp.lt.s32.totalorder %s234, 1
          %s238 = scalar_select %p237, %s234, 1
          %s239 = smul.addr %s236, 2
          %s240 = sadd.s32 %s238, %s239
          %s241 = smul.addr %s240, 4
          %s242 = scalar_lea.vmem %s0, %s241
          %s243 = smul.u32 2, %s22
        $region36: #{tpu_custom_call.1} parent=31 // pred_fallthru
          _
      $region32: #{tpu_custom_call.1} parent=5 // pred_fallthru
        _
      %p244 = scmp.le.s32.totalorder 1, %s14
      %p245 = scmp.lt.s32.totalorder %s14, 3
      %p246 = pnand %p244, %p245
      %p247 = pneg %p246
      // Predicated region
      $region37: #{tpu_custom_call.1} parent=5 // pred_check
        _
      $region38: #{tpu_custom_call.1} parent=5 // pred_check_branch
        %249 = sbr.rel (%p246) target = $region40
      $region39: #{tpu_custom_call.1} parent=5 // pred_region
        %s250 = ssub.s32 %s14, 1
        %s251 = smul.u32 2, %s25
        %p252 = scmp.lt.s32.totalorder %s24, 1
        %s253 = scalar_select %p252, %s24, 1
        %p254 = scmp.lt.s32.totalorder %s251, 1
        %s255 = scalar_select %p254, %s251, 1
        %s256 = smul.addr %s253, 2
        %s257 = sadd.s32 %s255, %s256
        %s258 = smul.addr %s257, 4
        %s259 = scalar_lea.vmem %s0, %s258
        %p260 = pneg %p61
        %p261 = pneg %p58
        %p262 = scmp.lt.s32.totalorder %s26, 0
        %s263 = scalar_select %p262, %s26, 0
        %s264 = smul.addr %s263, 8
        %s265 = scalar_lea.vmem %s1, %s264
        %p266 = pneg %p87
        %p267 = pneg %p84
        %p268 = scmp.lt.s32.totalorder %s26, 0
        %s269 = scalar_select %p268, %s26, 0
        %s270 = smul.addr %s269, 8
        %s271 = scalar_lea.vmem %s2, %s270
        %p272 = pneg %p113
        %p273 = pneg %p110
        %p274 = scmp.lt.s32.totalorder %s26, 0
        %s275 = scalar_select %p274, %s26, 0
        %s276 = smul.addr %s275, 4
        %s277 = scalar_lea.vmem %s3, %s276
        %p278 = pneg %p139
        %p279 = pneg %p136
        %p280 = pneg %p160
        %p281 = pneg %p157
        %p282 = pneg %p188
        %p283 = pneg %p185
        %s284 = sand.u32 %s175, 1
        %s285 = scalar_lea.sflag [#allocation3], %s284
        %s286 = sand.u32 %s175, 1
        %s287 = smul.addr %s286, 8
        %s288 = scalar_lea.vmem [#allocation2], %s287
        %s289 = smul.u32 2, %s25
        %p290 = scmp.lt.s32.totalorder %s24, 1
        %s291 = scalar_select %p290, %s24, 1
        %p292 = scmp.lt.s32.totalorder %s289, 1
        %s293 = scalar_select %p292, %s289, 1
        %s294 = smul.addr %s291, 2
        %s295 = sadd.s32 %s293, %s294
        %s296 = smul.addr %s295, 4
        %s297 = scalar_lea.vmem %s0, %s296
        %s298 = smul.u32 2, %s25
        %p299 = scmp.lt.s32.totalorder %s26, 0
        %s300 = scalar_select %p299, %s26, 0
        %s301 = smul.addr %s300, 8
        %s302 = scalar_lea.vmem %s1, %s301
        %p303 = scmp.lt.s32.totalorder %s26, 0
        %s304 = scalar_select %p303, %s26, 0
        %s305 = smul.addr %s304, 8
        %s306 = scalar_lea.vmem %s2, %s305
        %p307 = scmp.lt.s32.totalorder %s26, 0
        %s308 = scalar_select %p307, %s26, 0
        %s309 = smul.addr %s308, 4
        %s310 = scalar_lea.vmem %s3, %s309
        %s311 = smul.u32 2, %s25
        %v312 = vld [vmem:[%s297] sm:$0xff]
        %v313 = vld [vmem:[%s302] sm:$0xff]
        %v314 = vld [vmem:[%s306] sm:$0xff]
        %316 = vset.pattern.permute.xlu0 0
        %317 = vperm.xlu0 %316, %v314
        %v318 = vpop.permute.xlu0 %317
        %v321 = vcombine.high %v312, %v312
        %vm322 = vcmask 31744
        %v324 = vsel %vm322, %v313, 0
        %vm326 = vcmask 1043456
        %v327 = vsel %vm326, %v312, 0
        %v329 = vsel %vm326, %v321, 0
        %331 = vmatprep.subr.mxu0 0.0
        %332 = vmatpush1.msra.mxu0 0.0
        %333 = vmatprep.subr.mxu0 0.0
        %334 = vmatpush1.msra.mxu0 0.0
        %335 = vmatprep.subr.mxu0 0.0
        %336 = vmatpush1.msra.mxu0 0.0
        %337 = vmatprep.subr.mxu0 0.0
        %338 = vmatpush1.msra.mxu0 0.0
        %339 = vmatprep.subr.mxu0 0.0
        %340 = vmatpush1.msra.mxu0 0.0
        %341 = vmatprep.subr.mxu0 0.0
        %342 = vmatpush1.msra.mxu0 0.0
        %343 = vmatprep.subr.mxu0 0.0
        %344 = vmatpush1.msra.mxu0 0.0
        %345 = vmatprep.subr.mxu0 0.0
        %346 = vmatpush1.msra.mxu0 0.0
        %347 = vmatprep.subr.mxu0 0.0
        %348 = vmatpush1.msra.mxu0 0.0
        %349 = vmatprep.subr.mxu0 0.0
        %350 = vmatpush1.msra.mxu0 0.0
        %351 = vmatprep.subr.mxu0 0.0
        %352 = vmatpush1.msra.mxu0 0.0
        %353 = vmatprep.subr.mxu0 0.0
        %354 = vmatpush1.msra.mxu0 0.0
        %355 = vmatprep.subr.mxu0 0.0
        %356 = vmatpush1.msra.mxu0 0.0
        %357 = vmatprep.subr.mxu0 0.0
        %358 = vmatpush1.msra.mxu0 0.0
        %359 = vmatprep.subr.mxu0 0.0
        %360 = vmatpush1.msra.mxu0 0.0
        %361 = vmatprep.subr.mxu0 %v329
        %362 = vmatpush1.msra.mxu0 %v327
        %363 = vmatprep.subr.mxu0 0.0
        %364 = vmatpush2.msra.mxu0 0.0
        %365 = vmatprep.subr.mxu0 0.0
        %366 = vmatpush2.msra.mxu0 0.0
        %367 = vmatprep.subr.mxu0 0.0
        %368 = vmatpush2.msra.mxu0 0.0
        %369 = vmatprep.subr.mxu0 0.0
        %370 = vmatpush2.msra.mxu0 0.0
        %371 = vmatprep.subr.mxu0 0.0
        %372 = vmatpush2.msra.mxu0 0.0
        %373 = vmatprep.subr.mxu0 0.0
        %374 = vmatpush2.msra.mxu0 0.0
        %375 = vmatprep.subr.mxu0 0.0
        %376 = vmatpush2.msra.mxu0 0.0
        %377 = vmatprep.subr.mxu0 0.0
        %378 = vmatpush2.msra.mxu0 0.0
        %379 = vmatprep.subr.mxu0 0.0
        %380 = vmatpush2.msra.mxu0 0.0
        %381 = vmatprep.subr.mxu0 0.0
        %382 = vmatpush2.msra.mxu0 0.0
        %383 = vmatprep.subr.mxu0 0.0
        %384 = vmatpush2.msra.mxu0 0.0
        %385 = vmatprep.subr.mxu0 0.0
        %386 = vmatpush2.msra.mxu0 0.0
        %387 = vmatprep.subr.mxu0 0.0
        %388 = vmatpush2.msra.mxu0 0.0
        %389 = vmatprep.subr.mxu0 0.0
        %390 = vmatpush2.msra.mxu0 0.0
        %391 = vmatprep.subr.mxu0 0.0
        %392 = vmatpush2.msra.mxu0 0.0
        %393 = vmatprep.subr.mxu0 0.0
        %394 = vmatpush2.msra.mxu0 0.0
        %395 = vmatprep.mubr.f32.mxu0 0.0
        %396 = vmatmul.mubr.f32.gmra.mxu0 %v324
        %v397 = vpop.f32.mrf.mxu0
        %v398 = vadd.f32 %v318, %v397
        %v399 = vpop.f32.mrf.mxu0
        %v400 = vadd.f32 %v318, %v399
        %401 = vdwg.mxu0
        %s402 = scalar_lea.vmem %s302, 8
        %v403 = vld [vmem:[%s402] sm:$0xff]
        %s404 = scalar_lea.vmem %s306, 8
        %v405 = vld [vmem:[%s404] sm:$0xff]
        %407 = vset.pattern.permute.xlu0 0
        %408 = vperm.xlu0 %407, %v405
        %v409 = vpop.permute.xlu0 %408
        %v412 = vsel %vm322, %v403, 0
        %414 = vmatprep.subr.mxu0 0.0
        %415 = vmatpush1.msra.mxu0 0.0
        %416 = vmatprep.subr.mxu0 0.0
        %417 = vmatpush1.msra.mxu0 0.0
        %418 = vmatprep.subr.mxu0 0.0
        %419 = vmatpush1.msra.mxu0 0.0
        %420 = vmatprep.subr.mxu0 0.0
        %421 = vmatpush1.msra.mxu0 0.0
        %422 = vmatprep.subr.mxu0 0.0
        %423 = vmatpush1.msra.mxu0 0.0
        %424 = vmatprep.subr.mxu0 0.0
        %425 = vmatpush1.msra.mxu0 0.0
        %426 = vmatprep.subr.mxu0 0.0
        %427 = vmatpush1.msra.mxu0 0.0
        %428 = vmatprep.subr.mxu0 0.0
        %429 = vmatpush1.msra.mxu0 0.0
        %430 = vmatprep.subr.mxu0 0.0
        %431 = vmatpush1.msra.mxu0 0.0
        %432 = vmatprep.subr.mxu0 0.0
        %433 = vmatpush1.msra.mxu0 0.0
        %434 = vmatprep.subr.mxu0 0.0
        %435 = vmatpush1.msra.mxu0 0.0
        %436 = vmatprep.subr.mxu0 0.0
        %437 = vmatpush1.msra.mxu0 0.0
        %438 = vmatprep.subr.mxu0 0.0
        %439 = vmatpush1.msra.mxu0 0.0
        %440 = vmatprep.subr.mxu0 0.0
        %441 = vmatpush1.msra.mxu0 0.0
        %442 = vmatprep.subr.mxu0 0.0
        %443 = vmatpush1.msra.mxu0 0.0
        %444 = vmatprep.subr.mxu0 %v329
        %445 = vmatpush1.msra.mxu0 %v327
        %446 = vmatprep.subr.mxu0 0.0
        %447 = vmatpush2.msra.mxu0 0.0
        %448 = vmatprep.subr.mxu0 0.0
        %449 = vmatpush2.msra.mxu0 0.0
        %450 = vmatprep.subr.mxu0 0.0
        %451 = vmatpush2.msra.mxu0 0.0
        %452 = vmatprep.subr.mxu0 0.0
        %453 = vmatpush2.msra.mxu0 0.0
        %454 = vmatprep.subr.mxu0 0.0
        %455 = vmatpush2.msra.mxu0 0.0
        %456 = vmatprep.subr.mxu0 0.0
        %457 = vmatpush2.msra.mxu0 0.0
        %458 = vmatprep.subr.mxu0 0.0
        %459 = vmatpush2.msra.mxu0 0.0
        %460 = vmatprep.subr.mxu0 0.0
        %461 = vmatpush2.msra.mxu0 0.0
        %462 = vmatprep.subr.mxu0 0.0
        %463 = vmatpush2.msra.mxu0 0.0
        %464 = vmatprep.subr.mxu0 0.0
        %465 = vmatpush2.msra.mxu0 0.0
        %466 = vmatprep.subr.mxu0 0.0
        %467 = vmatpush2.msra.mxu0 0.0
        %468 = vmatprep.subr.mxu0 0.0
        %469 = vmatpush2.msra.mxu0 0.0
        %470 = vmatprep.subr.mxu0 0.0
        %471 = vmatpush2.msra.mxu0 0.0
        %472 = vmatprep.subr.mxu0 0.0
        %473 = vmatpush2.msra.mxu0 0.0
        %474 = vmatprep.subr.mxu0 0.0
        %475 = vmatpush2.msra.mxu0 0.0
        %476 = vmatprep.subr.mxu0 0.0
        %477 = vmatpush2.msra.mxu0 0.0
        %478 = vmatprep.mubr.f32.mxu0 0.0
        %479 = vmatmul.mubr.f32.gmra.mxu0 %v412
        %v480 = vpop.f32.mrf.mxu0
        %v481 = vadd.f32 %v409, %v480
        %v482 = vpop.f32.mrf.mxu0
        %v483 = vadd.f32 %v409, %v482
        %484 = vdwg.mxu0
        %v485 = vxor.u32 %v398, 2147483648
        %v486 = vxor.u32 %v400, 2147483648
        %v487 = vmul.f32 %v485, 1.442695
        %v488 = vpow.pop %v487
        %v489 = vmul.f32 %v486, 1.442695
        %v490 = vpow.pop %v489
        %v491 = vadd.f32 %v488, 1.0
        %v492 = vadd.f32 %v490, 1.0
        %v493 = vrcp.pop %v491
        %v494 = vmul.f32 1.0, %v493
        %v495 = vrcp.pop %v492
        %v496 = vmul.f32 1.0, %v495
        %v497 = vmul.f32 %v398, %v494
        %v498 = vmul.f32 %v400, %v496
        %v499 = vmul.f32 %v497, %v481
        %v500 = vmul.f32 %v498, %v483
        %v501 = vld [vmem:[%s310] sm:$0xf]
        %v502 = vld [vmem:[%s4] sm:$0xf]
        %504 = vset.pattern.permute.xlu0 0
        %505 = vperm.xlu0 %504, %v502
        %v506 = vpop.permute.xlu0 %505
        %vm508 = vcmask 64512
        %v510 = vsel %vm508, %v501, 0
        %512 = vmatprep.subr.mxu0 0.0
        %513 = vmatpush1.msra.mxu0 0.0
        %514 = vmatprep.subr.mxu0 0.0
        %515 = vmatpush1.msra.mxu0 0.0
        %516 = vmatprep.subr.mxu0 0.0
        %517 = vmatpush1.msra.mxu0 0.0
        %518 = vmatprep.subr.mxu0 0.0
        %519 = vmatpush1.msra.mxu0 0.0
        %520 = vmatprep.subr.mxu0 0.0
        %521 = vmatpush1.msra.mxu0 0.0
        %522 = vmatprep.subr.mxu0 0.0
        %523 = vmatpush1.msra.mxu0 0.0
        %524 = vmatprep.subr.mxu0 0.0
        %525 = vmatpush1.msra.mxu0 0.0
        %526 = vmatprep.subr.mxu0 0.0
        %527 = vmatpush1.msra.mxu0 0.0
        %528 = vmatprep.subr.mxu0 0.0
        %529 = vmatpush1.msra.mxu0 0.0
        %530 = vmatprep.subr.mxu0 0.0
        %531 = vmatpush1.msra.mxu0 0.0
        %532 = vmatprep.subr.mxu0 0.0
        %533 = vmatpush1.msra.mxu0 0.0
        %534 = vmatprep.subr.mxu0 0.0
        %535 = vmatpush1.msra.mxu0 0.0
        %536 = vmatprep.subr.mxu0 0.0
        %537 = vmatpush1.msra.mxu0 0.0
        %538 = vmatprep.subr.mxu0 0.0
        %539 = vmatpush1.msra.mxu0 0.0
        %540 = vmatprep.subr.mxu0 0.0
        %541 = vmatpush1.msra.mxu0 0.0
        %542 = vmatprep.subr.mxu0 %v500
        %543 = vmatpush1.msra.mxu0 %v499
        %544 = vmatprep.subr.mxu0 0.0
        %545 = vmatpush2.msra.mxu0 0.0
        %546 = vmatprep.subr.mxu0 0.0
        %547 = vmatpush2.msra.mxu0 0.0
        %548 = vmatprep.subr.mxu0 0.0
        %549 = vmatpush2.msra.mxu0 0.0
        %550 = vmatprep.subr.mxu0 0.0
        %551 = vmatpush2.msra.mxu0 0.0
        %552 = vmatprep.subr.mxu0 0.0
        %553 = vmatpush2.msra.mxu0 0.0
        %554 = vmatprep.subr.mxu0 0.0
        %555 = vmatpush2.msra.mxu0 0.0
        %556 = vmatprep.subr.mxu0 0.0
        %557 = vmatpush2.msra.mxu0 0.0
        %558 = vmatprep.subr.mxu0 0.0
        %559 = vmatpush2.msra.mxu0 0.0
        %560 = vmatprep.subr.mxu0 0.0
        %561 = vmatpush2.msra.mxu0 0.0
        %562 = vmatprep.subr.mxu0 0.0
        %563 = vmatpush2.msra.mxu0 0.0
        %564 = vmatprep.subr.mxu0 0.0
        %565 = vmatpush2.msra.mxu0 0.0
        %566 = vmatprep.subr.mxu0 0.0
        %567 = vmatpush2.msra.mxu0 0.0
        %568 = vmatprep.subr.mxu0 0.0
        %569 = vmatpush2.msra.mxu0 0.0
        %570 = vmatprep.subr.mxu0 0.0
        %571 = vmatpush2.msra.mxu0 0.0
        %572 = vmatprep.subr.mxu0 0.0
        %573 = vmatpush2.msra.mxu0 0.0
        %574 = vmatprep.subr.mxu0 0.0
        %575 = vmatpush2.msra.mxu0 0.0
        %576 = vmatprep.mubr.f32.mxu0 0.0
        %577 = vmatmul.mubr.f32.gmra.mxu0 %v510
        %v578 = vpop.f32.mrf.mxu0
        %v579 = vadd.f32 %v506, %v578
        %v580 = vpop.f32.mrf.mxu0
        %v581 = vadd.f32 %v506, %v580
        %582 = vdwg.mxu0
        %v585 = vcombine.low %v579, %v581
        %587 = vst [vmem:[%s288] sm:$0xff] %v585
        %s588 = sand.u32 %s175, 1
        %s589 = scalar_lea.sflag [#allocation3], %s588
        %s590 = sand.u32 %s175, 1
        %s591 = smul.addr %s590, 8
        %s592 = scalar_lea.vmem [#allocation2], %s591
        // Predicated region
        $region41: #{tpu_custom_call.1} parent=39 // pred_check
          %p593 = pneg %p185
        $region42: #{tpu_custom_call.1} parent=39 // pred_check_branch
          %595 = sbr.rel (%p593) target = $region44
        $region43: #{tpu_custom_call.1} parent=39 // pred_region
          %s596 = smul.u32 2, %s25
          %s598 = ssub.s32 128, 128
          %599 = vsyncadd %s589, %s598
          %s600 = smul.addr %s24, 2
          %s601 = sadd.s32 %s596, %s600
          %s602 = smul.addr %s601, 64
          %s603 = scalar_lea.hbm %s5, %s602
          %s605 = sshll.u32 %s592, 4
          %s606 = int_to_ptr.vmem [resolvable:$true] %s605
          %608 = dma.vmem_to_hbm [thread:$0]  %s606, 128, %s603, %s589
        $region44: #{tpu_custom_call.1} parent=39 // pred_fallthru
          _
      $region40: #{tpu_custom_call.1} parent=5 // pred_fallthru
        _
      %p609 = scmp.le.s32.totalorder 2, %s14
      // Predicated region
      $region45: #{tpu_custom_call.1} parent=5 // pred_check
        %p610 = pneg %p609
      $region46: #{tpu_custom_call.1} parent=5 // pred_check_branch
        %612 = sbr.rel (%p610) target = $region48
      $region47: #{tpu_custom_call.1} parent=5 // pred_region
        %s613 = ssub.s32 %s14, 2
        // Predicated region
        $region49: #{tpu_custom_call.1} parent=47 // pred_check
          %p614 = pneg %p191
        $region50: #{tpu_custom_call.1} parent=47 // pred_check_branch
          %616 = sbr.rel (%p614) target = $region52
        $region51: #{tpu_custom_call.1} parent=47 // pred_region
          %s617 = sand.u32 %s176, 1
          %s618 = scalar_lea.sflag [#allocation3], %s617
          %s619 = sand.u32 %s176, 1
          %s620 = smul.addr %s619, 8
          %s621 = scalar_lea.vmem [#allocation2], %s620
          %622 = dma.done %s618, 128
        $region52: #{tpu_custom_call.1} parent=47 // pred_fallthru
          _
      $region48: #{tpu_custom_call.1} parent=5 // pred_fallthru
        _
    $region6: #{tpu_custom_call.1} parent=1 // loop_footer
      %s18 = sadd.s32 1, %s14
    $region7: #{tpu_custom_call.1} parent=1 // loop_footer_branch
      %13 = sbr.rel target = $region3
    $region8: #{tpu_custom_call.1} parent=1 // loop_exit
      _
    %623 = vsyncpa [#allocation3], 1
    %s624 = scalar_lea.sflag [#allocation3], 1
    %625 = vsyncpa %s624, 1

</llo_original>
